<compile_context>
chip_gen: v6e
topology: v6e:2x2x1
jax: 0.10.0
libtpu: 0.0.40
codegen_flags: <defaults>
</compile_context>

<pallas_src>
import functools

import jax
import jax.numpy as jnp
from jax.experimental import pallas as pl
from jax.experimental.pallas import tpu as pltpu


# ---------------------------------------------------------------------------
# Pallas kernel: whole DecoderStep forward, all operands resident in VMEM.
# ---------------------------------------------------------------------------
def _decoder_step_kernel(
    featf_ref,                 # [bs*P, E]  flattened encoder features
    emb_ref,                   # [bs, M]
    h_ref, c_ref,              # [bs, D], [bs, D]
    w1t_ref,                   # [E, A]   fc1 weight (pre-transposed)
    b12_ref,                   # [1, A]   b1 + b2 (fc2 bias folded in)
    w3_ref,                    # [1, A]   fc3 weight row (bias cancels in softmax)
    whf_ref,                   # [D, 4D+A+E]  fused [whh | w2 | wbeta] (pre-T)
    bhf_ref,                   # [1, 4D+A+E]  fused [bih+bhh | 0 | bbeta]
    wih_e_ref,                 # [M, 4D]  W_ih (embed part, pre-transposed)
    wih_c_ref,                 # [E, 4D]  W_ih (context part, pre-transposed)
    wfct_ref,                  # [D, V]   fc weight (pre-transposed)
    bfc_ref,                   # [1, V]
    preds_ref, alpha_ref, h_out_ref, c_out_ref,
    *, bs, P,
):
    featf = featf_ref[...]                     # [bs*P, E]
    emb = emb_ref[...]                         # [bs, M]
    h = h_ref[...]                             # [bs, D]
    c = c_ref[...]                             # [bs, D]

    D = h.shape[1]
    A = w1t_ref.shape[1]
    E = featf.shape[1]

    # ------------- single fused matmul contracting over h ------------------
    # columns: [0:4D]  -> h @ whh.T + bih + bhh   (LSTM recurrent term)
    #          [4D:4D+A] -> h @ w2.T              (attention hidden proj)
    #          [4D+A:]   -> h @ wbeta.T + bbeta   (gate pre-activation)
    h_all = jnp.dot(h, whf_ref[...],
                    preferred_element_type=jnp.float32) + bhf_ref[...]
    whh_part = h_all[:, :4 * D]                # [bs, 4D] (lane-tile aligned)
    h_proj = h_all[:, 4 * D:4 * D + A]         # [bs, A]
    gate = jax.nn.sigmoid(h_all[:, 4 * D + A:])  # [bs, E]

    # ------------------------- attention ----------------------------------
    # fc1 on flattened features: one (bs*P, E) @ (E, A) matmul.
    enc_proj = jnp.dot(featf, w1t_ref[...],
                       preferred_element_type=jnp.float32) + b12_ref[...]
    enc_proj = enc_proj.reshape(bs, P, A)      # minor dim preserved -> cheap

    act = jnp.tanh(enc_proj + h_proj[:, None, :])     # [bs, P, A]

    # fc3 (out width 1): VPU multiply + lane reduce; fc3 bias dropped — it is
    # constant along the softmax axis so softmax (hence alpha/context) is
    # numerically unchanged.
    align = jnp.sum(act * w3_ref[...][None, :, :], axis=-1, keepdims=True)

    # softmax over pixel axis
    m = jnp.max(align, axis=1, keepdims=True)
    e = jnp.exp(align - m)
    attn = e / jnp.sum(e, axis=1, keepdims=True)       # [bs, P, 1]

    # context vector
    feat3 = featf.reshape(bs, P, E)
    context = jnp.sum(feat3 * attn, axis=1)            # [bs, E]
    context = gate * context

    # --------------------------- LSTMCell ----------------------------------
    # input is cat([emb, context]); W_ih is pre-split, so no concat needed.
    gates = (
        jnp.dot(emb, wih_e_ref[...], preferred_element_type=jnp.float32)
        + jnp.dot(context, wih_c_ref[...], preferred_element_type=jnp.float32)
        + whh_part                                      # biases already folded
    )                                                   # [bs, 4D]

    i_g = jax.nn.sigmoid(gates[:, 0 * D:1 * D])
    f_g = jax.nn.sigmoid(gates[:, 1 * D:2 * D])
    g_g = jnp.tanh(gates[:, 2 * D:3 * D])
    o_g = jax.nn.sigmoid(gates[:, 3 * D:4 * D])

    c_new = f_g * c + i_g * g_g
    h_new = o_g * jnp.tanh(c_new)

    # --------------- output projection (dropout == identity) ---------------
    preds = jnp.dot(h_new, wfct_ref[...],
                    preferred_element_type=jnp.float32) + bfc_ref[...]

    preds_ref[...] = preds
    alpha_ref[...] = attn[:, :, 0]
    h_out_ref[...] = h_new
    c_out_ref[...] = c_new


# ---------------------------------------------------------------------------
# Weight preparation: transpose / fuse / fold once (trace-time layout work).
# ---------------------------------------------------------------------------
def prepare_decoder_params(p):
    """PyTorch-layout params -> fused/pre-transposed kernel params."""
    E = p['wbeta'].shape[0]
    M = p['wih'].shape[1] - E
    fused = {}
    fused['w1t'] = p['w1'].T                                   # [E, A]
    fused['b12'] = p['b1'] + p['b2']                           # [1, A]
    fused['w3'] = p['w3']                                      # [1, A]
    # fused h-weight: [D, 4D + A + E], whh segment first (tile aligned)
    fused['whf'] = jnp.concatenate(
        [p['whh'].T, p['w2'].T, p['wbeta'].T], axis=1)
    fused['bhf'] = jnp.concatenate(
        [p['bih'] + p['bhh'], jnp.zeros_like(p['b2']), p['bbeta']], axis=1)
    fused['wih_e'] = p['wih'][:, :M].T                         # [M, 4D]
    fused['wih_c'] = p['wih'][:, M:].T                         # [E, 4D]
    fused['wfct'] = p['wfc'].T                                 # [D, V]
    fused['bfc'] = p['bfc']                                    # [1, V]
    return fused


# ---------------------------------------------------------------------------
# Wrapper
# ---------------------------------------------------------------------------
def decoder_step(fused, features, embeddings, h, c, gate_idx):
    """Pallas implementation of DecoderStep.forward.

    gate_idx is a static Python int; the batch slice and the feature flatten
    happen in plain JAX (free layout glue), the hot path runs in the kernel.
    """
    feat = features[:gate_idx]
    emb = embeddings[:gate_idx]
    h = h[:gate_idx]
    c = c[:gate_idx]

    bs, P, E = feat.shape
    D = h.shape[1]
    V = fused['wfct'].shape[1]

    featf = feat.reshape(bs * P, E)            # contiguous, free reshape

    vmem = pl.BlockSpec(memory_space=pltpu.MemorySpace.VMEM)

    ins = (
        featf, emb, h, c,
        fused['w1t'], fused['b12'], fused['w3'],
        fused['whf'], fused['bhf'],
        fused['wih_e'], fused['wih_c'],
        fused['wfct'], fused['bfc'],
    )

    out_shape = (
        jax.ShapeDtypeStruct((bs, V), jnp.float32),   # preds
        jax.ShapeDtypeStruct((bs, P), jnp.float32),   # alpha
        jax.ShapeDtypeStruct((bs, D), jnp.float32),   # h
        jax.ShapeDtypeStruct((bs, D), jnp.float32),   # c
    )

    kernel = functools.partial(_decoder_step_kernel, bs=bs, P=P)

    return pl.pallas_call(
        kernel,
        out_shape=out_shape,
        in_specs=[vmem] * len(ins),
        out_specs=(vmem, vmem, vmem, vmem),
        # state (h, c) updated in place across calls
        input_output_aliases={2: 2, 3: 3},
    )(*ins)


# ---------------------------------------------------------------------------
# Deterministic parameter init (PyTorch-style uniform) and pure-JAX reference
# ---------------------------------------------------------------------------
def _uniform(key, shape, fan_in):
    bound = 1.0 / jnp.sqrt(jnp.float32(fan_in))
    return jax.random.uniform(key, shape, jnp.float32, -bound, bound)


def make_params(key, E, D, A, M, V):
    ks = jax.random.split(key, 18)
    p = {}
    # attention.fc1 : Linear(E, A)
    p['w1'] = _uniform(ks[0], (A, E), E)
    p['b1'] = _uniform(ks[1], (1, A), E)
    # attention.fc2 : Linear(D, A)
    p['w2'] = _uniform(ks[2], (A, D), D)
    p['b2'] = _uniform(ks[3], (1, A), D)
    # attention.fc3 : Linear(A, 1)
    p['w3'] = _uniform(ks[4], (1, A), A)
    p['b3'] = _uniform(ks[5], (1, 1), A)
    # f_beta : Linear(D, E)
    p['wbeta'] = _uniform(ks[6], (E, D), D)
    p['bbeta'] = _uniform(ks[7], (1, E), D)
    # LSTMCell(M + E, D)
    p['wih'] = _uniform(ks[8], (4 * D, M + E), D)
    p['bih'] = _uniform(ks[9], (1, 4 * D), D)
    p['whh'] = _uniform(ks[10], (4 * D, D), D)
    p['bhh'] = _uniform(ks[11], (1, 4 * D), D)
    # fc : Linear(hidden_dim == D, V)
    p['wfc'] = _uniform(ks[12], (V, D), D)
    p['bfc'] = _uniform(ks[13], (1, V), D)
    return p


def decoder_step_ref(params, feat, emb, h, c):
    """Pure-JAX reference (mirrors the PyTorch forward, incl. fc3 bias)."""
    enc_proj = jnp.einsum('bpe,ae->bpa', feat, params['w1']) + params['b1']
    h_proj = h @ params['w2'].T + params['b2']
    align = jnp.einsum('bpa,oa->bpo', jnp.tanh(enc_proj + h_proj[:, None, :]),
                       params['w3']) + params['b3']
    attn = jax.nn.softmax(align, axis=1)
    context = jnp.sum(feat * attn, axis=1)
    gate = jax.nn.sigmoid(h @ params['wbeta'].T + params['bbeta'])
    context = gate * context
    x = jnp.concatenate([emb, context], axis=1)
    gates = x @ params['wih'].T + params['bih'] + h @ params['whh'].T + params['bhh']
    D = h.shape[1]
    i_g = jax.nn.sigmoid(gates[:, :D])
    f_g = jax.nn.sigmoid(gates[:, D:2 * D])
    g_g = jnp.tanh(gates[:, 2 * D:3 * D])
    o_g = jax.nn.sigmoid(gates[:, 3 * D:])
    c_new = f_g * c + i_g * g_g
    h_new = o_g * jnp.tanh(c_new)
    preds = h_new @ params['wfc'].T + params['bfc']
    return preds, attn[:, :, 0], h_new, c_new


if __name__ == "__main__":
    # small cfg: encoder_dim=32, decoder_dim=hidden_dim=32, attention_dim=32,
    # embed_dim=32, num_pixels=16, vocab=64, batch=8  (bs*P = 128)
    bs, P, E, D, A, M, V = 8, 16, 32, 32, 32, 32, 64

    key = jax.random.PRNGKey(0)
    kp, kf, ke, kh, kc = jax.random.split(key, 5)

    params = make_params(kp, E, D, A, M, V)
    fused = prepare_decoder_params(params)

    features = jax.random.normal(kf, (bs, P, E), jnp.float32)
    embeddings = jax.random.normal(ke, (bs, M), jnp.float32)
    h0 = jax.random.normal(kh, (bs, D), jnp.float32)
    c0 = jax.random.normal(kc, (bs, D), jnp.float32)

    gate_idx = bs  # full batch

    preds, alpha, h1, c1 = decoder_step(
        fused, features, embeddings, h0, c0, gate_idx)
    jax.block_until_ready((preds, alpha, h1, c1))

    # correctness check against pure-JAX reference
    r_preds, r_alpha, r_h, r_c = decoder_step_ref(
        params, features[:gate_idx], embeddings[:gate_idx],
        h0[:gate_idx], c0[:gate_idx])
    assert jnp.allclose(preds, r_preds, atol=1e-4, rtol=1e-4)
    assert jnp.allclose(alpha, r_alpha, atol=1e-5, rtol=1e-4)
    assert jnp.allclose(h1, r_h, atol=1e-5, rtol=1e-4)
    assert jnp.allclose(c1, r_c, atol=1e-5, rtol=1e-4)

    print("KERNEL_OK")
</pallas_src>

<mosaic_0001>
module attributes {stable_mosaic.version = 11 : i64} {
  func.func @_decoder_step_kernel(%arg0: memref<128x32xf32, #tpu.memory_space<vmem>>, %arg1: memref<8x32xf32, #tpu.memory_space<vmem>>, %arg2: memref<8x32xf32, #tpu.memory_space<vmem>>, %arg3: memref<8x32xf32, #tpu.memory_space<vmem>>, %arg4: memref<32x32xf32, #tpu.memory_space<vmem>>, %arg5: memref<1x32xf32, #tpu.memory_space<vmem>>, %arg6: memref<1x32xf32, #tpu.memory_space<vmem>>, %arg7: memref<32x192xf32, #tpu.memory_space<vmem>>, %arg8: memref<1x192xf32, #tpu.memory_space<vmem>>, %arg9: memref<32x128xf32, #tpu.memory_space<vmem>>, %arg10: memref<32x128xf32, #tpu.memory_space<vmem>>, %arg11: memref<32x64xf32, #tpu.memory_space<vmem>>, %arg12: memref<1x64xf32, #tpu.memory_space<vmem>>, %arg13: memref<8x64xf32, #tpu.memory_space<vmem>>, %arg14: memref<8x16xf32, #tpu.memory_space<vmem>>, %arg15: memref<8x32xf32, #tpu.memory_space<vmem>>, %arg16: memref<8x32xf32, #tpu.memory_space<vmem>>) attributes {dimension_semantics = [], scalar_prefetch = 0 : i64, scratch_operands = 0 : i64, tpu.core_type = #tpu.core_type<tc>} {
    %c0 = arith.constant 0 : index
    %c0_0 = arith.constant 0 : index
    %0 = vector.load %arg0[%c0, %c0_0] : memref<128x32xf32, #tpu.memory_space<vmem>>, vector<128x32xf32>
    %c0_1 = arith.constant 0 : index
    %c0_2 = arith.constant 0 : index
    %1 = vector.load %arg1[%c0_1, %c0_2] : memref<8x32xf32, #tpu.memory_space<vmem>>, vector<8x32xf32>
    %c0_3 = arith.constant 0 : index
    %c0_4 = arith.constant 0 : index
    %2 = vector.load %arg2[%c0_3, %c0_4] : memref<8x32xf32, #tpu.memory_space<vmem>>, vector<8x32xf32>
    %c0_5 = arith.constant 0 : index
    %c0_6 = arith.constant 0 : index
    %3 = vector.load %arg3[%c0_5, %c0_6] : memref<8x32xf32, #tpu.memory_space<vmem>>, vector<8x32xf32>
    %c0_7 = arith.constant 0 : index
    %c0_8 = arith.constant 0 : index
    %4 = vector.load %arg7[%c0_7, %c0_8] : memref<32x192xf32, #tpu.memory_space<vmem>>, vector<32x192xf32>
    %cst = arith.constant dense<0.000000e+00> : vector<8x192xf32>
    %5 = tpu.matmul %2, %4, %cst {dimension_numbers = #tpu.dot_dimension_numbers<[1], [0], [0], [1], [0, 0, 1, 1], [], []>} : vector<8x32xf32>, vector<32x192xf32>, vector<8x192xf32> -> vector<8x192xf32>
    %c0_9 = arith.constant 0 : index
    %c0_10 = arith.constant 0 : index
    %6 = vector.load %arg8[%c0_9, %c0_10] : memref<1x192xf32, #tpu.memory_space<vmem>>, vector<1x192xf32>
    %7 = vector.broadcast %6 : vector<1x192xf32> to vector<8x192xf32>
    %8 = arith.addf %5, %7 : vector<8x192xf32>
    %9 = vector.extract_strided_slice %8 {offsets = [0, 0], sizes = [8, 128], strides = [1, 1]} : vector<8x192xf32> to vector<8x128xf32>
    %10 = vector.extract_strided_slice %8 {offsets = [0, 128], sizes = [8, 32], strides = [1, 1]} : vector<8x192xf32> to vector<8x32xf32>
    %11 = vector.extract_strided_slice %8 {offsets = [0, 160], sizes = [8, 32], strides = [1, 1]} : vector<8x192xf32> to vector<8x32xf32>
    %12 = arith.negf %11 : vector<8x32xf32>
    %13 = math.exp %12 : vector<8x32xf32>
    %cst_11 = arith.constant 1.000000e+00 : f32
    %14 = vector.broadcast %cst_11 : f32 to vector<8x32xf32>
    %15 = arith.addf %14, %13 : vector<8x32xf32>
    %16 = arith.divf %14, %15 : vector<8x32xf32>
    %c0_12 = arith.constant 0 : index
    %c0_13 = arith.constant 0 : index
    %17 = vector.load %arg4[%c0_12, %c0_13] : memref<32x32xf32, #tpu.memory_space<vmem>>, vector<32x32xf32>
    %cst_14 = arith.constant dense<0.000000e+00> : vector<128x32xf32>
    %18 = tpu.matmul %0, %17, %cst_14 {dimension_numbers = #tpu.dot_dimension_numbers<[1], [0], [0], [1], [0, 0, 1, 1], [], []>} : vector<128x32xf32>, vector<32x32xf32>, vector<128x32xf32> -> vector<128x32xf32>
    %c0_15 = arith.constant 0 : index
    %c0_16 = arith.constant 0 : index
    %19 = vector.load %arg5[%c0_15, %c0_16] : memref<1x32xf32, #tpu.memory_space<vmem>>, vector<1x32xf32>
    %20 = vector.broadcast %19 : vector<1x32xf32> to vector<128x32xf32>
    %21 = arith.addf %18, %20 : vector<128x32xf32>
    %22 = vector.shape_cast %21 : vector<128x32xf32> to vector<8x16x32xf32>
    %23 = vector.shape_cast %10 : vector<8x32xf32> to vector<8x1x32xf32>
    %24 = vector.broadcast %23 : vector<8x1x32xf32> to vector<8x16x32xf32>
    %25 = arith.addf %22, %24 : vector<8x16x32xf32>
    %26 = math.tanh %25 : vector<8x16x32xf32>
    %c0_17 = arith.constant 0 : index
    %c0_18 = arith.constant 0 : index
    %27 = vector.load %arg6[%c0_17, %c0_18] : memref<1x32xf32, #tpu.memory_space<vmem>>, vector<1x32xf32>
    %28 = vector.shape_cast %27 : vector<1x32xf32> to vector<1x1x32xf32>
    %29 = vector.broadcast %28 : vector<1x1x32xf32> to vector<8x16x32xf32>
    %30 = arith.mulf %26, %29 : vector<8x16x32xf32>
    %cst_19 = arith.constant dense<0.000000e+00> : vector<8x16xf32>
    %31 = vector.multi_reduction <add>, %30, %cst_19 [2] : vector<8x16x32xf32> to vector<8x16xf32>
    %32 = vector.shape_cast %31 : vector<8x16xf32> to vector<8x16x1xf32>
    %cst_20 = arith.constant dense<0xFF800000> : vector<8x1xf32>
    %33 = vector.multi_reduction <maximumf>, %32, %cst_20 [1] : vector<8x16x1xf32> to vector<8x1xf32>
    %34 = vector.shape_cast %33 : vector<8x1xf32> to vector<8x1x1xf32>
    %35 = vector.broadcast %34 : vector<8x1x1xf32> to vector<8x16x1xf32>
    %36 = arith.subf %32, %35 : vector<8x16x1xf32>
    %37 = math.exp %36 : vector<8x16x1xf32>
    %cst_21 = arith.constant dense<0.000000e+00> : vector<8x1xf32>
    %38 = vector.multi_reduction <add>, %37, %cst_21 [1] : vector<8x16x1xf32> to vector<8x1xf32>
    %39 = vector.shape_cast %38 : vector<8x1xf32> to vector<8x1x1xf32>
    %40 = vector.broadcast %39 : vector<8x1x1xf32> to vector<8x16x1xf32>
    %41 = arith.divf %37, %40 : vector<8x16x1xf32>
    %42 = vector.shape_cast %0 : vector<128x32xf32> to vector<8x16x32xf32>
    %43 = vector.broadcast %41 : vector<8x16x1xf32> to vector<8x16x32xf32>
    %44 = arith.mulf %42, %43 : vector<8x16x32xf32>
    %cst_22 = arith.constant dense<0.000000e+00> : vector<8x32xf32>
    %45 = vector.multi_reduction <add>, %44, %cst_22 [1] : vector<8x16x32xf32> to vector<8x32xf32>
    %46 = arith.mulf %16, %45 : vector<8x32xf32>
    %c0_23 = arith.constant 0 : index
    %c0_24 = arith.constant 0 : index
    %47 = vector.load %arg9[%c0_23, %c0_24] : memref<32x128xf32, #tpu.memory_space<vmem>>, vector<32x128xf32>
    %cst_25 = arith.constant dense<0.000000e+00> : vector<8x128xf32>
    %48 = tpu.matmul %1, %47, %cst_25 {dimension_numbers = #tpu.dot_dimension_numbers<[1], [0], [0], [1], [0, 0, 1, 1], [], []>} : vector<8x32xf32>, vector<32x128xf32>, vector<8x128xf32> -> vector<8x128xf32>
    %c0_26 = arith.constant 0 : index
    %c0_27 = arith.constant 0 : index
    %49 = vector.load %arg10[%c0_26, %c0_27] : memref<32x128xf32, #tpu.memory_space<vmem>>, vector<32x128xf32>
    %cst_28 = arith.constant dense<0.000000e+00> : vector<8x128xf32>
    %50 = tpu.matmul %46, %49, %cst_28 {dimension_numbers = #tpu.dot_dimension_numbers<[1], [0], [0], [1], [0, 0, 1, 1], [], []>} : vector<8x32xf32>, vector<32x128xf32>, vector<8x128xf32> -> vector<8x128xf32>
    %51 = arith.addf %48, %50 : vector<8x128xf32>
    %52 = arith.addf %51, %9 : vector<8x128xf32>
    %53 = vector.extract_strided_slice %52 {offsets = [0, 0], sizes = [8, 32], strides = [1, 1]} : vector<8x128xf32> to vector<8x32xf32>
    %54 = arith.negf %53 : vector<8x32xf32>
    %55 = math.exp %54 : vector<8x32xf32>
    %cst_29 = arith.constant 1.000000e+00 : f32
    %56 = vector.broadcast %cst_29 : f32 to vector<8x32xf32>
    %57 = arith.addf %56, %55 : vector<8x32xf32>
    %58 = arith.divf %56, %57 : vector<8x32xf32>
    %59 = vector.extract_strided_slice %52 {offsets = [0, 32], sizes = [8, 32], strides = [1, 1]} : vector<8x128xf32> to vector<8x32xf32>
    %60 = arith.negf %59 : vector<8x32xf32>
    %61 = math.exp %60 : vector<8x32xf32>
    %cst_30 = arith.constant 1.000000e+00 : f32
    %62 = vector.broadcast %cst_30 : f32 to vector<8x32xf32>
    %63 = arith.addf %62, %61 : vector<8x32xf32>
    %64 = arith.divf %62, %63 : vector<8x32xf32>
    %65 = vector.extract_strided_slice %52 {offsets = [0, 64], sizes = [8, 32], strides = [1, 1]} : vector<8x128xf32> to vector<8x32xf32>
    %66 = math.tanh %65 : vector<8x32xf32>
    %67 = vector.extract_strided_slice %52 {offsets = [0, 96], sizes = [8, 32], strides = [1, 1]} : vector<8x128xf32> to vector<8x32xf32>
    %68 = arith.negf %67 : vector<8x32xf32>
    %69 = math.exp %68 : vector<8x32xf32>
    %cst_31 = arith.constant 1.000000e+00 : f32
    %70 = vector.broadcast %cst_31 : f32 to vector<8x32xf32>
    %71 = arith.addf %70, %69 : vector<8x32xf32>
    %72 = arith.divf %70, %71 : vector<8x32xf32>
    %73 = arith.mulf %64, %3 : vector<8x32xf32>
    %74 = arith.mulf %58, %66 : vector<8x32xf32>
    %75 = arith.addf %73, %74 : vector<8x32xf32>
    %76 = math.tanh %75 : vector<8x32xf32>
    %77 = arith.mulf %72, %76 : vector<8x32xf32>
    %c0_32 = arith.constant 0 : index
    %c0_33 = arith.constant 0 : index
    %78 = vector.load %arg11[%c0_32, %c0_33] : memref<32x64xf32, #tpu.memory_space<vmem>>, vector<32x64xf32>
    %cst_34 = arith.constant dense<0.000000e+00> : vector<8x64xf32>
    %79 = tpu.matmul %77, %78, %cst_34 {dimension_numbers = #tpu.dot_dimension_numbers<[1], [0], [0], [1], [0, 0, 1, 1], [], []>} : vector<8x32xf32>, vector<32x64xf32>, vector<8x64xf32> -> vector<8x64xf32>
    %c0_35 = arith.constant 0 : index
    %c0_36 = arith.constant 0 : index
    %80 = vector.load %arg12[%c0_35, %c0_36] : memref<1x64xf32, #tpu.memory_space<vmem>>, vector<1x64xf32>
    %81 = vector.broadcast %80 : vector<1x64xf32> to vector<8x64xf32>
    %82 = arith.addf %79, %81 : vector<8x64xf32>
    %c0_37 = arith.constant 0 : index
    %c0_38 = arith.constant 0 : index
    %83 = vector.load %arg13[%c0_37, %c0_38] : memref<8x64xf32, #tpu.memory_space<vmem>>, vector<8x64xf32>
    tpu.vector_store %arg13[%c0_37, %c0_38], %82 {strides = array<i32>} : memref<8x64xf32, #tpu.memory_space<vmem>>, vector<8x64xf32>,
    %84 = vector.shape_cast %41 : vector<8x16x1xf32> to vector<8x16xf32>
    %c0_39 = arith.constant 0 : index
    %c0_40 = arith.constant 0 : index
    %85 = vector.load %arg14[%c0_39, %c0_40] : memref<8x16xf32, #tpu.memory_space<vmem>>, vector<8x16xf32>
    tpu.vector_store %arg14[%c0_39, %c0_40], %84 {strides = array<i32>} : memref<8x16xf32, #tpu.memory_space<vmem>>, vector<8x16xf32>,
    %c0_41 = arith.constant 0 : index
    %c0_42 = arith.constant 0 : index
    %86 = vector.load %arg15[%c0_41, %c0_42] : memref<8x32xf32, #tpu.memory_space<vmem>>, vector<8x32xf32>
    tpu.vector_store %arg15[%c0_41, %c0_42], %77 {strides = array<i32>} : memref<8x32xf32, #tpu.memory_space<vmem>>, vector<8x32xf32>,
    %c0_43 = arith.constant 0 : index
    %c0_44 = arith.constant 0 : index
    %87 = vector.load %arg16[%c0_43, %c0_44] : memref<8x32xf32, #tpu.memory_space<vmem>>, vector<8x32xf32>
    tpu.vector_store %arg16[%c0_43, %c0_44], %75 {strides = array<i32>} : memref<8x32xf32, #tpu.memory_space<vmem>>, vector<8x32xf32>,
    return
  }
}

</mosaic_0001>

<llo_original>
// kernel: tpu_custom_call.1
$region0: #{tpu_custom_call.1}
  #allocation0 [shape = 'u32[]', space=smem, size = 0x4, offset = 0x4, fixed_abs, tag = 'smem constant byte address 0x4 - core index']
  #allocation1 [shape = 'u32[144,128]{1,0:T(1,128)}', space=vmem, size = 0x12000, scoped, tag = 'internal scratch']
  %s0 = inlined_call_operand.vmem [shape: f32[128,32], index: 0, kind: input, shape index: {}]
  %s1 = inlined_call_operand.hbm [shape: f32[8,32], index: 1, kind: input, shape index: {}]
  %s2 = inlined_call_operand.hbm [shape: f32[8,32], index: 2, kind: input, shape index: {}, may-alias: {2,15}]
  %s3 = inlined_call_operand.hbm [shape: f32[8,32], index: 3, kind: input, shape index: {}, may-alias: {3,16}]
  %s4 = inlined_call_operand.vmem [shape: f32[32,32], index: 4, kind: input, shape index: {}]
  %s5 = inlined_call_operand.hbm [shape: f32[1,32], index: 5, kind: input, shape index: {}]
  %s6 = inlined_call_operand.hbm [shape: f32[1,32], index: 6, kind: input, shape index: {}]
  %s7 = inlined_call_operand.vmem [shape: f32[32,192], index: 7, kind: input, shape index: {}]
  %s8 = inlined_call_operand.hbm [shape: f32[1,192], index: 8, kind: input, shape index: {}]
  %s9 = inlined_call_operand.vmem [shape: f32[32,128], index: 9, kind: input, shape index: {}]
  %s10 = inlined_call_operand.vmem [shape: f32[32,128], index: 10, kind: input, shape index: {}]
  %s11 = inlined_call_operand.vmem [shape: f32[32,64], index: 11, kind: input, shape index: {}]
  %s12 = inlined_call_operand.hbm [shape: f32[1,64], index: 12, kind: input, shape index: {}]
  %s13 = inlined_call_operand.hbm [shape: f32[8,64], index: 13, kind: output, shape index: {0}]
  %s14 = inlined_call_operand.hbm [shape: f32[8,16], index: 14, kind: output, shape index: {1}]
  %s15 = inlined_call_operand.hbm [shape: f32[8,32], index: 15, kind: output, shape index: {2}, may-alias: {2,15}]
  %s16 = inlined_call_operand.hbm [shape: f32[8,32], index: 16, kind: output, shape index: {3}, may-alias: {3,16}]
  %17 = xla_tuple %s13, %s14, %s15, %s16
  %s18 = sld [smem:[#allocation0]]
  $region114: #{tpu_custom_call.1} parent=0
    _
  %s20 = ssub.s32 1, %s18
  %s21 = scalar_select 0, %s20, %s18
  $region1: #{tpu_custom_call.1} parent=0
    #allocation2 [shape = 'u8[4096]{0}', space=vmem, size = 0x1000, scoped, tag = 'input window, operand 1, single buffered']
    #allocation3 [shape = 's32[1]{0}', space=sflag, size = 0x4, scoped, tag = 'scoped memory for tpu_custom_call.1']
    #allocation4 [shape = 's32[1]{0}', space=sflag, size = 0x4, scoped, tag = 'scoped memory for tpu_custom_call.1']
    #allocation5 [shape = 'u8[4096]{0}', space=vmem, size = 0x1000, scoped, tag = 'input window, operand 2, single buffered']
    #allocation6 [shape = 's32[1]{0}', space=sflag, size = 0x4, scoped, tag = 'scoped memory for tpu_custom_call.1']
    #allocation7 [shape = 'u8[4096]{0}', space=vmem, size = 0x1000, scoped, tag = 'input window, operand 3, single buffered']
    #allocation8 [shape = 'u8[512]{0}', space=vmem, size = 0x400, scoped, tag = 'input window, operand 5, single buffered']
    #allocation9 [shape = 's32[1]{0}', space=sflag, size = 0x4, scoped, tag = 'scoped memory for tpu_custom_call.1']
    #allocation10 [shape = 'u8[512]{0}', space=vmem, size = 0x400, scoped, tag = 'input window, operand 6, single buffered']
    #allocation11 [shape = 'u8[1024]{0}', space=vmem, size = 0x400, scoped, tag = 'input window, operand 8, single buffered']
    #allocation12 [shape = 's32[1]{0}', space=sflag, size = 0x4, scoped, tag = 'scoped memory for tpu_custom_call.1']
    #allocation13 [shape = 'u8[512]{0}', space=vmem, size = 0x400, scoped, tag = 'input window, operand 12, single buffered']
    #allocation14 [shape = 'u8[4096]{0}', space=vmem, size = 0x1000, scoped, tag = 'output window, operand 0, single buffered']
    #allocation15 [shape = 'u8[4096]{0}', space=vmem, size = 0x1000, scoped, tag = 'output window, operand 1, single buffered']
    #allocation16 [shape = 's32[1]{0}', space=sflag, size = 0x4, scoped, tag = 'scoped memory for tpu_custom_call.1']
    #allocation17 [shape = 'u8[4096]{0}', space=vmem, size = 0x1000, scoped, tag = 'output window, operand 2, single buffered']
    #allocation18 [shape = 'u8[4096]{0}', space=vmem, size = 0x1000, scoped, tag = 'output window, operand 3, single buffered']
    #allocation19 [shape = 's32[1]{0}', space=sflag, size = 0x4, scoped, tag = 'scoped memory for tpu_custom_call.1']
    %22 = vsyncpa [#allocation3], 0
    %23 = vsyncpa [#allocation6], 0
    %24 = vsyncpa [#allocation9], 0
    %25 = vsyncpa [#allocation12], 0
    %26 = vsyncpa [#allocation4], 0
    %27 = vsyncpa [#allocation16], 0
    %28 = vsyncpa [#allocation19], 0
    // Predicated region
    $region2: #{tpu_custom_call.1} parent=1 // pred_check
      _
    $region3: #{tpu_custom_call.1} parent=1 // pred_check_branch
      %30 = sbr.rel (0) target = $region5
    $region4: #{tpu_custom_call.1} parent=1 // pred_region
      _
    $region5: #{tpu_custom_call.1} parent=1 // pred_fallthru
      _
    // Predicated region
    $region6: #{tpu_custom_call.1} parent=1 // pred_check
      _
    $region7: #{tpu_custom_call.1} parent=1 // pred_check_branch
      %32 = sbr.rel (0) target = $region9
    $region8: #{tpu_custom_call.1} parent=1 // pred_region
      %s34 = ssub.s32 128, 128
      %35 = vsyncadd [#allocation3], %s34
      %s37 = sshll.u32 [#allocation2], 4
      %s38 = int_to_ptr.vmem [resolvable:$true] %s37
      %40 = dma.hbm_to_vmem [thread:$0]  %s1, 128, %s38, [#allocation3]
    $region9: #{tpu_custom_call.1} parent=1 // pred_fallthru
      _
    // Predicated region
    $region10: #{tpu_custom_call.1} parent=1 // pred_check
      _
    $region11: #{tpu_custom_call.1} parent=1 // pred_check_branch
      %42 = sbr.rel (0) target = $region13
    $region12: #{tpu_custom_call.1} parent=1 // pred_region
      %s44 = ssub.s32 128, 128
      %45 = vsyncadd [#allocation6], %s44
      %s47 = sshll.u32 [#allocation5], 4
      %s48 = int_to_ptr.vmem [resolvable:$true] %s47
      %50 = dma.hbm_to_vmem [thread:$0]  %s2, 128, %s48, [#allocation6]
    $region13: #{tpu_custom_call.1} parent=1 // pred_fallthru
      _
    // Predicated region
    $region14: #{tpu_custom_call.1} parent=1 // pred_check
      _
    $region15: #{tpu_custom_call.1} parent=1 // pred_check_branch
      %52 = sbr.rel (0) target = $region17
    $region16: #{tpu_custom_call.1} parent=1 // pred_region
      %s54 = ssub.s32 128, 128
      %55 = vsyncadd [#allocation6], %s54
      %s57 = sshll.u32 [#allocation7], 4
      %s58 = int_to_ptr.vmem [resolvable:$true] %s57
      %60 = dma.hbm_to_vmem [thread:$0]  %s3, 128, %s58, [#allocation6]
    $region17: #{tpu_custom_call.1} parent=1 // pred_fallthru
      _
    // Predicated region
    $region18: #{tpu_custom_call.1} parent=1 // pred_check
      _
    $region19: #{tpu_custom_call.1} parent=1 // pred_check_branch
      %62 = sbr.rel (0) target = $region21
    $region20: #{tpu_custom_call.1} parent=1 // pred_region
      _
    $region21: #{tpu_custom_call.1} parent=1 // pred_fallthru
      _
    // Predicated region
    $region22: #{tpu_custom_call.1} parent=1 // pred_check
      _
    $region23: #{tpu_custom_call.1} parent=1 // pred_check_branch
      %64 = sbr.rel (0) target = $region25
    $region24: #{tpu_custom_call.1} parent=1 // pred_region
      %s66 = ssub.s32 16, 16
      %67 = vsyncadd [#allocation9], %s66
      %s69 = sshll.u32 [#allocation8], 4
      %s70 = int_to_ptr.vmem [resolvable:$true] %s69
      %72 = dma.hbm_to_vmem [thread:$0]  %s5, 16, %s70, [#allocation9]
    $region25: #{tpu_custom_call.1} parent=1 // pred_fallthru
      _
    // Predicated region
    $region26: #{tpu_custom_call.1} parent=1 // pred_check
      _
    $region27: #{tpu_custom_call.1} parent=1 // pred_check_branch
      %74 = sbr.rel (0) target = $region29
    $region28: #{tpu_custom_call.1} parent=1 // pred_region
      %s76 = ssub.s32 16, 16
      %77 = vsyncadd [#allocation9], %s76
      %s79 = sshll.u32 [#allocation10], 4
      %s80 = int_to_ptr.vmem [resolvable:$true] %s79
      %82 = dma.hbm_to_vmem [thread:$0]  %s6, 16, %s80, [#allocation9]
    $region29: #{tpu_custom_call.1} parent=1 // pred_fallthru
      _
    // Predicated region
    $region30: #{tpu_custom_call.1} parent=1 // pred_check
      _
    $region31: #{tpu_custom_call.1} parent=1 // pred_check_branch
      %84 = sbr.rel (0) target = $region33
    $region32: #{tpu_custom_call.1} parent=1 // pred_region
      _
    $region33: #{tpu_custom_call.1} parent=1 // pred_fallthru
      _
    // Predicated region
    $region34: #{tpu_custom_call.1} parent=1 // pred_check
      _
    $region35: #{tpu_custom_call.1} parent=1 // pred_check_branch
      %86 = sbr.rel (0) target = $region37
    $region36: #{tpu_custom_call.1} parent=1 // pred_region
      %s88 = ssub.s32 32, 32
      %89 = vsyncadd [#allocation12], %s88
      %s91 = sshll.u32 [#allocation11], 4
      %s92 = int_to_ptr.vmem [resolvable:$true] %s91
      %94 = dma.hbm_to_vmem [thread:$0]  %s8, 32, %s92, [#allocation12]
    $region37: #{tpu_custom_call.1} parent=1 // pred_fallthru
      _
    // Predicated region
    $region38: #{tpu_custom_call.1} parent=1 // pred_check
      _
    $region39: #{tpu_custom_call.1} parent=1 // pred_check_branch
      %96 = sbr.rel (0) target = $region41
    $region40: #{tpu_custom_call.1} parent=1 // pred_region
      _
    $region41: #{tpu_custom_call.1} parent=1 // pred_fallthru
      _
    // Predicated region
    $region42: #{tpu_custom_call.1} parent=1 // pred_check
      _
    $region43: #{tpu_custom_call.1} parent=1 // pred_check_branch
      %98 = sbr.rel (0) target = $region45
    $region44: #{tpu_custom_call.1} parent=1 // pred_region
      _
    $region45: #{tpu_custom_call.1} parent=1 // pred_fallthru
      _
    // Predicated region
    $region46: #{tpu_custom_call.1} parent=1 // pred_check
      _
    $region47: #{tpu_custom_call.1} parent=1 // pred_check_branch
      %100 = sbr.rel (0) target = $region49
    $region48: #{tpu_custom_call.1} parent=1 // pred_region
      _
    $region49: #{tpu_custom_call.1} parent=1 // pred_fallthru
      _
    // Predicated region
    $region50: #{tpu_custom_call.1} parent=1 // pred_check
      _
    $region51: #{tpu_custom_call.1} parent=1 // pred_check_branch
      %102 = sbr.rel (0) target = $region53
    $region52: #{tpu_custom_call.1} parent=1 // pred_region
      %s104 = ssub.s32 16, 16
      %105 = vsyncadd [#allocation12], %s104
      %s107 = sshll.u32 [#allocation13], 4
      %s108 = int_to_ptr.vmem [resolvable:$true] %s107
      %110 = dma.hbm_to_vmem [thread:$0]  %s12, 16, %s108, [#allocation12]
    $region53: #{tpu_custom_call.1} parent=1 // pred_fallthru
      _
    // Predicated region
    $region54: #{tpu_custom_call.1} parent=1 // pred_check
      _
    $region55: #{tpu_custom_call.1} parent=1 // pred_check_branch
      %112 = sbr.rel (0) target = $region57
    $region56: #{tpu_custom_call.1} parent=1 // pred_region
      %113 = dma.done [#allocation3], 128
    $region57: #{tpu_custom_call.1} parent=1 // pred_fallthru
      _
    // Predicated region
    $region58: #{tpu_custom_call.1} parent=1 // pred_check
      _
    $region59: #{tpu_custom_call.1} parent=1 // pred_check_branch
      %115 = sbr.rel (0) target = $region61
    $region60: #{tpu_custom_call.1} parent=1 // pred_region
      %116 = dma.done [#allocation6], 128
    $region61: #{tpu_custom_call.1} parent=1 // pred_fallthru
      _
    // Predicated region
    $region62: #{tpu_custom_call.1} parent=1 // pred_check
      _
    $region63: #{tpu_custom_call.1} parent=1 // pred_check_branch
      %118 = sbr.rel (0) target = $region65
    $region64: #{tpu_custom_call.1} parent=1 // pred_region
      %119 = dma.done [#allocation6], 128
    $region65: #{tpu_custom_call.1} parent=1 // pred_fallthru
      _
    // Predicated region
    $region66: #{tpu_custom_call.1} parent=1 // pred_check
      _
    $region67: #{tpu_custom_call.1} parent=1 // pred_check_branch
      %121 = sbr.rel (0) target = $region69
    $region68: #{tpu_custom_call.1} parent=1 // pred_region
      %122 = dma.done [#allocation9], 16
    $region69: #{tpu_custom_call.1} parent=1 // pred_fallthru
      _
    // Predicated region
    $region70: #{tpu_custom_call.1} parent=1 // pred_check
      _
    $region71: #{tpu_custom_call.1} parent=1 // pred_check_branch
      %124 = sbr.rel (0) target = $region73
    $region72: #{tpu_custom_call.1} parent=1 // pred_region
      %125 = dma.done [#allocation9], 16
    $region73: #{tpu_custom_call.1} parent=1 // pred_fallthru
      _
    // Predicated region
    $region74: #{tpu_custom_call.1} parent=1 // pred_check
      _
    $region75: #{tpu_custom_call.1} parent=1 // pred_check_branch
      %127 = sbr.rel (0) target = $region77
    $region76: #{tpu_custom_call.1} parent=1 // pred_region
      %128 = dma.done [#allocation12], 32
    $region77: #{tpu_custom_call.1} parent=1 // pred_fallthru
      _
    // Predicated region
    $region78: #{tpu_custom_call.1} parent=1 // pred_check
      _
    $region79: #{tpu_custom_call.1} parent=1 // pred_check_branch
      %130 = sbr.rel (0) target = $region81
    $region80: #{tpu_custom_call.1} parent=1 // pred_region
      %131 = dma.done [#allocation12], 16
    $region81: #{tpu_custom_call.1} parent=1 // pred_fallthru
      _
    %v132 = vld [vmem:[%s0] sm:$0xff]
    %v133 = vld [vmem:[%s0 + $0x8] sm:$0xff]
    %v134 = vld [vmem:[%s0 + $0x10] sm:$0xff]
    %v135 = vld [vmem:[%s0 + $0x18] sm:$0xff]
    %v136 = vld [vmem:[%s0 + $0x20] sm:$0xff]
    %v137 = vld [vmem:[%s0 + $0x28] sm:$0xff]
    %v138 = vld [vmem:[%s0 + $0x30] sm:$0xff]
    %v139 = vld [vmem:[%s0 + $0x38] sm:$0xff]
    %v140 = vld [vmem:[%s0 + $0x40] sm:$0xff]
    %v141 = vld [vmem:[%s0 + $0x48] sm:$0xff]
    %v142 = vld [vmem:[%s0 + $0x50] sm:$0xff]
    %v143 = vld [vmem:[%s0 + $0x58] sm:$0xff]
    %v144 = vld [vmem:[%s0 + $0x60] sm:$0xff]
    %v145 = vld [vmem:[%s0 + $0x68] sm:$0xff]
    %v146 = vld [vmem:[%s0 + $0x70] sm:$0xff]
    %v147 = vld [vmem:[%s0 + $0x78] sm:$0xff]
    %v148 = vld [vmem:[#allocation2] sm:$0xff]
    %v149 = vld [vmem:[#allocation5] sm:$0xff]
    %v150 = vld [vmem:[#allocation7] sm:$0xff]
    %v151 = vld [vmem:[%s7] sm:$0xff]
    %v152 = vld [vmem:[%s7 + $0x8] sm:$0xff]
    %v153 = vld [vmem:[%s7 + $0x10] sm:$0xff]
    %v154 = vld [vmem:[%s7 + $0x18] sm:$0xff]
    %v155 = vld [vmem:[%s7 + $0x20] sm:$0xff]
    %v156 = vld [vmem:[%s7 + $0x28] sm:$0xff]
    %v157 = vld [vmem:[%s7 + $0x30] sm:$0xff]
    %v158 = vld [vmem:[%s7 + $0x38] sm:$0xff]
    %v159 = vld [vmem:[#allocation11] sm:$0x3]
    %v161 = vlaneseq
    %v162 = vshrl.u32 %v161, 7
    %v163 = vsub.s32 0, %v162
    %v164 = vrot.slane %v159, %v163
    %v165 = vlaneseq
    %v166 = vshrl.u32 %v165, 7
    %v167 = vsub.s32 1, %v166
    %v168 = vrot.slane %v159, %v167
    %vm171 = vcmask 261120
    %v173 = vsel %vm171, %v149, 0
    %175 = vmatprep.subr.mxu0 0.0
    %176 = vmatpush1.msra.mxu0 0.0
    %177 = vmatprep.subr.mxu0 0.0
    %178 = vmatpush1.msra.mxu0 0.0
    %179 = vmatprep.subr.mxu0 0.0
    %180 = vmatpush1.msra.mxu0 0.0
    %181 = vmatprep.subr.mxu0 0.0
    %182 = vmatpush1.msra.mxu0 0.0
    %183 = vmatprep.subr.mxu0 0.0
    %184 = vmatpush1.msra.mxu0 0.0
    %185 = vmatprep.subr.mxu0 0.0
    %186 = vmatpush1.msra.mxu0 0.0
    %187 = vmatprep.subr.mxu0 0.0
    %188 = vmatpush1.msra.mxu0 0.0
    %189 = vmatprep.subr.mxu0 0.0
    %190 = vmatpush1.msra.mxu0 0.0
    %191 = vmatprep.subr.mxu0 0.0
    %192 = vmatpush1.msra.mxu0 0.0
    %193 = vmatprep.subr.mxu0 0.0
    %194 = vmatpush1.msra.mxu0 0.0
    %195 = vmatprep.subr.mxu0 0.0
    %196 = vmatpush1.msra.mxu0 0.0
    %197 = vmatprep.subr.mxu0 0.0
    %198 = vmatpush1.msra.mxu0 0.0
    %199 = vmatprep.subr.mxu0 %v158
    %200 = vmatpush1.msra.mxu0 %v157
    %201 = vmatprep.subr.mxu0 %v156
    %202 = vmatpush1.msra.mxu0 %v155
    %203 = vmatprep.subr.mxu0 %v154
    %204 = vmatpush1.msra.mxu0 %v153
    %205 = vmatprep.subr.mxu0 %v152
    %206 = vmatpush1.msra.mxu0 %v151
    %207 = vmatprep.subr.mxu0 0.0
    %208 = vmatpush2.msra.mxu0 0.0
    %209 = vmatprep.subr.mxu0 0.0
    %210 = vmatpush2.msra.mxu0 0.0
    %211 = vmatprep.subr.mxu0 0.0
    %212 = vmatpush2.msra.mxu0 0.0
    %213 = vmatprep.subr.mxu0 0.0
    %214 = vmatpush2.msra.mxu0 0.0
    %215 = vmatprep.subr.mxu0 0.0
    %216 = vmatpush2.msra.mxu0 0.0
    %217 = vmatprep.subr.mxu0 0.0
    %218 = vmatpush2.msra.mxu0 0.0
    %219 = vmatprep.subr.mxu0 0.0
    %220 = vmatpush2.msra.mxu0 0.0
    %221 = vmatprep.subr.mxu0 0.0
    %222 = vmatpush2.msra.mxu0 0.0
    %223 = vmatprep.subr.mxu0 0.0
    %224 = vmatpush2.msra.mxu0 0.0
    %225 = vmatprep.subr.mxu0 0.0
    %226 = vmatpush2.msra.mxu0 0.0
    %227 = vmatprep.subr.mxu0 0.0
    %228 = vmatpush2.msra.mxu0 0.0
    %229 = vmatprep.subr.mxu0 0.0
    %230 = vmatpush2.msra.mxu0 0.0
    %231 = vmatprep.subr.mxu0 0.0
    %232 = vmatpush2.msra.mxu0 0.0
    %233 = vmatprep.subr.mxu0 0.0
    %234 = vmatpush2.msra.mxu0 0.0
    %235 = vmatprep.subr.mxu0 0.0
    %236 = vmatpush2.msra.mxu0 0.0
    %237 = vmatprep.subr.mxu0 0.0
    %238 = vmatpush2.msra.mxu0 0.0
    %239 = vmatprep.mubr.f32.mxu0 0.0
    %240 = vmatmul.mubr.f32.gmra.mxu0 %v173
    %v241 = vpop.f32.mrf.mxu0
    %v242 = vadd.f32 %v164, %v241
    %v243 = vpop.f32.mrf.mxu0
    %v244 = vadd.f32 %v168, %v243
    %245 = vdwg.mxu0
    %v246 = vxor.u32 %v244, 2147483648
    %v247 = vmul.f32 %v246, 1.442695
    %v248 = vpow.pop %v247
    %v249 = vadd.f32 %v248, 1.0
    %v250 = vrcp.pop %v249
    %v251 = vmul.f32 1.0, %v250
    %v252 = vld [vmem:[%s4] sm:$0xff]
    %v253 = vld [vmem:[%s4 + $0x8] sm:$0xff]
    %v254 = vld [vmem:[%s4 + $0x10] sm:$0xff]
    %v255 = vld [vmem:[%s4 + $0x18] sm:$0xff]
    %v256 = vld [vmem:[#allocation8] sm:$0x1]
    %v258 = vlaneseq
    %v259 = vshrl.u32 %v258, 7
    %v260 = vsub.s32 0, %v259
    %v261 = vrot.slane %v256, %v260
    %v264 = vsel %vm171, %v132, 0
    %v267 = vsel %vm171, %v133, 0
    %v270 = vsel %vm171, %v134, 0
    %v273 = vsel %vm171, %v135, 0
    %v276 = vsel %vm171, %v136, 0
    %v279 = vsel %vm171, %v137, 0
    %v282 = vsel %vm171, %v138, 0
    %v285 = vsel %vm171, %v139, 0
    %v288 = vsel %vm171, %v140, 0
    %v291 = vsel %vm171, %v141, 0
    %v294 = vsel %vm171, %v142, 0
    %v297 = vsel %vm171, %v143, 0
    %v300 = vsel %vm171, %v144, 0
    %v303 = vsel %vm171, %v145, 0
    %v306 = vsel %vm171, %v146, 0
    %v309 = vsel %vm171, %v147, 0
    %311 = vmatprep.subr.mxu0 0.0
    %312 = vmatpush1.msra.mxu0 0.0
    %313 = vmatprep.subr.mxu0 0.0
    %314 = vmatpush1.msra.mxu0 0.0
    %315 = vmatprep.subr.mxu0 0.0
    %316 = vmatpush1.msra.mxu0 0.0
    %317 = vmatprep.subr.mxu0 0.0
    %318 = vmatpush1.msra.mxu0 0.0
    %319 = vmatprep.subr.mxu0 0.0
    %320 = vmatpush1.msra.mxu0 0.0
    %321 = vmatprep.subr.mxu0 0.0
    %322 = vmatpush1.msra.mxu0 0.0
    %323 = vmatprep.subr.mxu0 0.0
    %324 = vmatpush1.msra.mxu0 0.0
    %325 = vmatprep.subr.mxu0 0.0
    %326 = vmatpush1.msra.mxu0 0.0
    %327 = vmatprep.subr.mxu0 0.0
    %328 = vmatpush1.msra.mxu0 0.0
    %329 = vmatprep.subr.mxu0 0.0
    %330 = vmatpush1.msra.mxu0 0.0
    %331 = vmatprep.subr.mxu0 0.0
    %332 = vmatpush1.msra.mxu0 0.0
    %333 = vmatprep.subr.mxu0 0.0
    %334 = vmatpush1.msra.mxu0 0.0
    %335 = vmatprep.subr.mxu0 0.0
    %336 = vmatpush1.msra.mxu0 %v255
    %337 = vmatprep.subr.mxu0 0.0
    %338 = vmatpush1.msra.mxu0 %v254
    %339 = vmatprep.subr.mxu0 0.0
    %340 = vmatpush1.msra.mxu0 %v253
    %341 = vmatprep.subr.mxu0 0.0
    %342 = vmatpush1.msra.mxu0 %v252
    %343 = vmatprep.subr.mxu0 0.0
    %344 = vmatpush2.msra.mxu0 0.0
    %345 = vmatprep.subr.mxu0 0.0
    %346 = vmatpush2.msra.mxu0 0.0
    %347 = vmatprep.subr.mxu0 0.0
    %348 = vmatpush2.msra.mxu0 0.0
    %349 = vmatprep.subr.mxu0 0.0
    %350 = vmatpush2.msra.mxu0 0.0
    %351 = vmatprep.subr.mxu0 0.0
    %352 = vmatpush2.msra.mxu0 0.0
    %353 = vmatprep.subr.mxu0 0.0
    %354 = vmatpush2.msra.mxu0 0.0
    %355 = vmatprep.subr.mxu0 0.0
    %356 = vmatpush2.msra.mxu0 0.0
    %357 = vmatprep.subr.mxu0 0.0
    %358 = vmatpush2.msra.mxu0 0.0
    %359 = vmatprep.subr.mxu0 0.0
    %360 = vmatpush2.msra.mxu0 0.0
    %361 = vmatprep.subr.mxu0 0.0
    %362 = vmatpush2.msra.mxu0 0.0
    %363 = vmatprep.subr.mxu0 0.0
    %364 = vmatpush2.msra.mxu0 0.0
    %365 = vmatprep.subr.mxu0 0.0
    %366 = vmatpush2.msra.mxu0 0.0
    %367 = vmatprep.subr.mxu0 0.0
    %368 = vmatpush2.msra.mxu0 0.0
    %369 = vmatprep.subr.mxu0 0.0
    %370 = vmatpush2.msra.mxu0 0.0
    %371 = vmatprep.subr.mxu0 0.0
    %372 = vmatpush2.msra.mxu0 0.0
    %373 = vmatprep.subr.mxu0 0.0
    %374 = vmatpush2.msra.mxu0 0.0
    %375 = vmatprep.mubr.f32.mxu0 0.0
    %376 = vmatmul.mubr.f32.gmra.mxu0 %v264
    %v377 = vpop.f32.mrf.mxu0
    %v378 = vadd.f32 %v261, %v377
    %v379 = vpop.f32.mrf.mxu0
    %380 = vmatprep.mubr.f32.mxu0 0.0
    %381 = vmatmul.mubr.f32.gmra.mxu0 %v267
    %v382 = vpop.f32.mrf.mxu0
    %v383 = vadd.f32 %v261, %v382
    %v384 = vpop.f32.mrf.mxu0
    %385 = vmatprep.mubr.f32.mxu0 0.0
    %386 = vmatmul.mubr.f32.gmra.mxu0 %v270
    %v387 = vpop.f32.mrf.mxu0
    %v388 = vadd.f32 %v261, %v387
    %v389 = vpop.f32.mrf.mxu0
    %390 = vmatprep.mubr.f32.mxu0 0.0
    %391 = vmatmul.mubr.f32.gmra.mxu0 %v273
    %v392 = vpop.f32.mrf.mxu0
    %v393 = vadd.f32 %v261, %v392
    %v394 = vpop.f32.mrf.mxu0
    %395 = vmatprep.mubr.f32.mxu0 0.0
    %396 = vmatmul.mubr.f32.gmra.mxu0 %v276
    %v397 = vpop.f32.mrf.mxu0
    %v398 = vadd.f32 %v261, %v397
    %v399 = vpop.f32.mrf.mxu0
    %400 = vmatprep.mubr.f32.mxu0 0.0
    %401 = vmatmul.mubr.f32.gmra.mxu0 %v279
    %v402 = vpop.f32.mrf.mxu0
    %v403 = vadd.f32 %v261, %v402
    %v404 = vpop.f32.mrf.mxu0
    %405 = vmatprep.mubr.f32.mxu0 0.0
    %406 = vmatmul.mubr.f32.gmra.mxu0 %v282
    %v407 = vpop.f32.mrf.mxu0
    %v408 = vadd.f32 %v261, %v407
    %v409 = vpop.f32.mrf.mxu0
    %410 = vmatprep.mubr.f32.mxu0 0.0
    %411 = vmatmul.mubr.f32.gmra.mxu0 %v285
    %v412 = vpop.f32.mrf.mxu0
    %v413 = vadd.f32 %v261, %v412
    %v414 = vpop.f32.mrf.mxu0
    %415 = vmatprep.mubr.f32.mxu0 0.0
    %416 = vmatmul.mubr.f32.gmra.mxu0 %v288
    %v417 = vpop.f32.mrf.mxu0
    %v418 = vadd.f32 %v261, %v417
    %v419 = vpop.f32.mrf.mxu0
    %420 = vmatprep.mubr.f32.mxu0 0.0
    %421 = vmatmul.mubr.f32.gmra.mxu0 %v291
    %v422 = vpop.f32.mrf.mxu0
    %v423 = vadd.f32 %v261, %v422
    %v424 = vpop.f32.mrf.mxu0
    %425 = vmatprep.mubr.f32.mxu0 0.0
    %426 = vmatmul.mubr.f32.gmra.mxu0 %v294
    %v427 = vpop.f32.mrf.mxu0
    %v428 = vadd.f32 %v261, %v427
    %v429 = vpop.f32.mrf.mxu0
    %430 = vmatprep.mubr.f32.mxu0 0.0
    %431 = vmatmul.mubr.f32.gmra.mxu0 %v297
    %v432 = vpop.f32.mrf.mxu0
    %v433 = vadd.f32 %v261, %v432
    %v434 = vpop.f32.mrf.mxu0
    %435 = vmatprep.mubr.f32.mxu0 0.0
    %436 = vmatmul.mubr.f32.gmra.mxu0 %v300
    %v437 = vpop.f32.mrf.mxu0
    %v438 = vadd.f32 %v261, %v437
    %v439 = vpop.f32.mrf.mxu0
    %440 = vmatprep.mubr.f32.mxu0 0.0
    %441 = vmatmul.mubr.f32.gmra.mxu0 %v303
    %v442 = vpop.f32.mrf.mxu0
    %v443 = vadd.f32 %v261, %v442
    %v444 = vpop.f32.mrf.mxu0
    %445 = vmatprep.mubr.f32.mxu0 0.0
    %446 = vmatmul.mubr.f32.gmra.mxu0 %v306
    %v447 = vpop.f32.mrf.mxu0
    %v448 = vadd.f32 %v261, %v447
    %v449 = vpop.f32.mrf.mxu0
    %450 = vmatprep.mubr.f32.mxu0 0.0
    %451 = vmatmul.mubr.f32.gmra.mxu0 %v309
    %v452 = vpop.f32.mrf.mxu0
    %v453 = vadd.f32 %v261, %v452
    %v454 = vpop.f32.mrf.mxu0
    %455 = vdwg.mxu0
    %v457 = vcombine.high %v244, %v244
    %v459 = vunpack.c.l.s4 1966171168
    %v460 = vunpack.c.0.s8 %v459
    %v461 = vlaneseq
    %v462 = vshrl.u32 %v461, 7
    %v463 = vsub.s32 %v460, %v462
    %v464 = vrot.slane %v244, %v463
    %v466 = vunpack.c.l.s4 1966171168
    %v467 = vunpack.c.0.s8 %v466
    %v468 = vlaneseq
    %v469 = vshrl.u32 %v468, 7
    %v470 = vsub.s32 %v467, %v469
    %v471 = vrot.slane %v457, %v470
    %v472 = vcombine.high %v464, %v464
    %v473 = vcombine.high %v471, %v471
    %v475 = vunpack.c.l.s4 1966171168
    %v476 = vunpack.c.0.s8 %v475
    %v477 = vlaneseq
    %v478 = vshrl.u32 %v477, 7
    %v479 = vsub.s32 %v476, %v478
    %v480 = vrot.slane %v464, %v479
    %v482 = vunpack.c.l.s4 1966171168
    %v483 = vunpack.c.0.s8 %v482
    %v484 = vlaneseq
    %v485 = vshrl.u32 %v484, 7
    %v486 = vsub.s32 %v483, %v485
    %v487 = vrot.slane %v471, %v486
    %v489 = vunpack.c.l.s4 1966171168
    %v490 = vunpack.c.0.s8 %v489
    %v491 = vlaneseq
    %v492 = vshrl.u32 %v491, 7
    %v493 = vsub.s32 %v490, %v492
    %v494 = vrot.slane %v472, %v493
    %v496 = vunpack.c.l.s4 1966171168
    %v497 = vunpack.c.0.s8 %v496
    %v498 = vlaneseq
    %v499 = vshrl.u32 %v498, 7
    %v500 = vsub.s32 %v497, %v499
    %v501 = vrot.slane %v473, %v500
    %v502 = vcombine.high %v480, %v480
    %v503 = vcombine.high %v487, %v487
    %v504 = vcombine.high %v494, %v494
    %v505 = vcombine.high %v501, %v501
    %v506 = vlaneseq
    %v507 = vshrl.u32 %v506, 7
    %v508 = vsub.s32 0, %v507
    %v509 = vrot.slane %v480, %v508
    %v510 = vlaneseq
    %v511 = vshrl.u32 %v510, 7
    %v512 = vsub.s32 0, %v511
    %v513 = vrot.slane %v494, %v512
    %v514 = vlaneseq
    %v515 = vshrl.u32 %v514, 7
    %v516 = vsub.s32 0, %v515
    %v517 = vrot.slane %v502, %v516
    %v518 = vlaneseq
    %v519 = vshrl.u32 %v518, 7
    %v520 = vsub.s32 0, %v519
    %v521 = vrot.slane %v504, %v520
    %v522 = vlaneseq
    %v523 = vshrl.u32 %v522, 7
    %v524 = vsub.s32 0, %v523
    %v525 = vrot.slane %v487, %v524
    %v526 = vlaneseq
    %v527 = vshrl.u32 %v526, 7
    %v528 = vsub.s32 0, %v527
    %v529 = vrot.slane %v501, %v528
    %v530 = vlaneseq
    %v531 = vshrl.u32 %v530, 7
    %v532 = vsub.s32 0, %v531
    %v533 = vrot.slane %v503, %v532
    %v534 = vlaneseq
    %v535 = vshrl.u32 %v534, 7
    %v536 = vsub.s32 0, %v535
    %v537 = vrot.slane %v505, %v536
    %v546 = vadd.f32 %v378, %v509
    %v547 = vadd.f32 %v383, %v509
    %v548 = vadd.f32 %v388, %v513
    %v549 = vadd.f32 %v393, %v513
    %v550 = vadd.f32 %v398, %v517
    %v551 = vadd.f32 %v403, %v517
    %v552 = vadd.f32 %v408, %v521
    %v553 = vadd.f32 %v413, %v521
    %v554 = vadd.f32 %v418, %v525
    %v555 = vadd.f32 %v423, %v525
    %v556 = vadd.f32 %v428, %v529
    %v557 = vadd.f32 %v433, %v529
    %v558 = vadd.f32 %v438, %v533
    %v559 = vadd.f32 %v443, %v533
    %v560 = vadd.f32 %v448, %v537
    %v561 = vadd.f32 %v453, %v537
    %v562 = vtanh.pop %v546
    %v563 = vtanh.pop %v547
    %v564 = vtanh.pop %v548
    %v565 = vtanh.pop %v549
    %v566 = vtanh.pop %v550
    %v567 = vtanh.pop %v551
    %v568 = vtanh.pop %v552
    %v569 = vtanh.pop %v553
    %v570 = vtanh.pop %v554
    %v571 = vtanh.pop %v555
    %v572 = vtanh.pop %v556
    %v573 = vtanh.pop %v557
    %v574 = vtanh.pop %v558
    %v575 = vtanh.pop %v559
    %v576 = vtanh.pop %v560
    %v577 = vtanh.pop %v561
    %v578 = vld [vmem:[#allocation10] sm:$0x1]
    %v580 = vlaneseq
    %v581 = vshrl.u32 %v580, 7
    %v582 = vsub.s32 0, %v581
    %v583 = vrot.slane %v578, %v582
    %v585 = vmul.f32 %v562, %v583
    %v586 = vmul.f32 %v563, %v583
    %v587 = vmul.f32 %v564, %v583
    %v588 = vmul.f32 %v565, %v583
    %v589 = vmul.f32 %v566, %v583
    %v590 = vmul.f32 %v567, %v583
    %v591 = vmul.f32 %v568, %v583
    %v592 = vmul.f32 %v569, %v583
    %v593 = vmul.f32 %v570, %v583
    %v594 = vmul.f32 %v571, %v583
    %v595 = vmul.f32 %v572, %v583
    %v596 = vmul.f32 %v573, %v583
    %v597 = vmul.f32 %v574, %v583
    %v598 = vmul.f32 %v575, %v583
    %v599 = vmul.f32 %v576, %v583
    %v600 = vmul.f32 %v577, %v583
    %v601 = vsel %vm171, %v585, 0.0
    %602 = vadd.xlane.f32.xlu0 %v601
    %v603 = vpop.xlane.xlu0 %602
    %v604 = vsel %vm171, %v586, 0.0
    %605 = vadd.xlane.f32.xlu0 %v604
    %v606 = vpop.xlane.xlu0 %605
    %v607 = vsel %vm171, %v587, 0.0
    %608 = vadd.xlane.f32.xlu0 %v607
    %v609 = vpop.xlane.xlu0 %608
    %v610 = vsel %vm171, %v588, 0.0
    %611 = vadd.xlane.f32.xlu0 %v610
    %v612 = vpop.xlane.xlu0 %611
    %v613 = vsel %vm171, %v589, 0.0
    %614 = vadd.xlane.f32.xlu0 %v613
    %v615 = vpop.xlane.xlu0 %614
    %v616 = vsel %vm171, %v590, 0.0
    %617 = vadd.xlane.f32.xlu0 %v616
    %v618 = vpop.xlane.xlu0 %617
    %v619 = vsel %vm171, %v591, 0.0
    %620 = vadd.xlane.f32.xlu0 %v619
    %v621 = vpop.xlane.xlu0 %620
    %v622 = vsel %vm171, %v592, 0.0
    %623 = vadd.xlane.f32.xlu0 %v622
    %v624 = vpop.xlane.xlu0 %623
    %v625 = vsel %vm171, %v593, 0.0
    %626 = vadd.xlane.f32.xlu0 %v625
    %v627 = vpop.xlane.xlu0 %626
    %v628 = vsel %vm171, %v594, 0.0
    %629 = vadd.xlane.f32.xlu0 %v628
    %v630 = vpop.xlane.xlu0 %629
    %v631 = vsel %vm171, %v595, 0.0
    %632 = vadd.xlane.f32.xlu0 %v631
    %v633 = vpop.xlane.xlu0 %632
    %v634 = vsel %vm171, %v596, 0.0
    %635 = vadd.xlane.f32.xlu0 %v634
    %v636 = vpop.xlane.xlu0 %635
    %v637 = vsel %vm171, %v597, 0.0
    %638 = vadd.xlane.f32.xlu0 %v637
    %v639 = vpop.xlane.xlu0 %638
    %v640 = vsel %vm171, %v598, 0.0
    %641 = vadd.xlane.f32.xlu0 %v640
    %v642 = vpop.xlane.xlu0 %641
    %v643 = vsel %vm171, %v599, 0.0
    %644 = vadd.xlane.f32.xlu0 %v643
    %v645 = vpop.xlane.xlu0 %644
    %v646 = vsel %vm171, %v600, 0.0
    %647 = vadd.xlane.f32.xlu0 %v646
    %v648 = vpop.xlane.xlu0 %647
    %v649 = vmax.f32 %v603, %v606
    %v650 = vrot.slane %v649, 4
    %v651 = vmax.f32 %v649, %v650
    %v652 = vrot.slane %v651, 2
    %v653 = vmax.f32 %v651, %v652
    %v654 = vrot.slane %v653, 1
    %v655 = vmax.f32 %v653, %v654
    %v656 = vmax.f32 %v609, %v612
    %v657 = vrot.slane %v656, 4
    %v658 = vmax.f32 %v656, %v657
    %v659 = vrot.slane %v658, 2
    %v660 = vmax.f32 %v658, %v659
    %v661 = vrot.slane %v660, 1
    %v662 = vmax.f32 %v660, %v661
    %v663 = vmax.f32 %v615, %v618
    %v664 = vrot.slane %v663, 4
    %v665 = vmax.f32 %v663, %v664
    %v666 = vrot.slane %v665, 2
    %v667 = vmax.f32 %v665, %v666
    %v668 = vrot.slane %v667, 1
    %v669 = vmax.f32 %v667, %v668
    %v670 = vmax.f32 %v621, %v624
    %v671 = vrot.slane %v670, 4
    %v672 = vmax.f32 %v670, %v671
    %v673 = vrot.slane %v672, 2
    %v674 = vmax.f32 %v672, %v673
    %v675 = vrot.slane %v674, 1
    %v676 = vmax.f32 %v674, %v675
    %v677 = vmax.f32 %v627, %v630
    %v678 = vrot.slane %v677, 4
    %v679 = vmax.f32 %v677, %v678
    %v680 = vrot.slane %v679, 2
    %v681 = vmax.f32 %v679, %v680
    %v682 = vrot.slane %v681, 1
    %v683 = vmax.f32 %v681, %v682
    %v684 = vmax.f32 %v633, %v636
    %v685 = vrot.slane %v684, 4
    %v686 = vmax.f32 %v684, %v685
    %v687 = vrot.slane %v686, 2
    %v688 = vmax.f32 %v686, %v687
    %v689 = vrot.slane %v688, 1
    %v690 = vmax.f32 %v688, %v689
    %v691 = vmax.f32 %v639, %v642
    %v692 = vrot.slane %v691, 4
    %v693 = vmax.f32 %v691, %v692
    %v694 = vrot.slane %v693, 2
    %v695 = vmax.f32 %v693, %v694
    %v696 = vrot.slane %v695, 1
    %v697 = vmax.f32 %v695, %v696
    %v698 = vmax.f32 %v645, %v648
    %v699 = vrot.slane %v698, 4
    %v700 = vmax.f32 %v698, %v699
    %v701 = vrot.slane %v700, 2
    %v702 = vmax.f32 %v700, %v701
    %v703 = vrot.slane %v702, 1
    %v704 = vmax.f32 %v702, %v703
    %v705 = vsub.f32 %v603, %v655
    %v706 = vsub.f32 %v606, %v655
    %v707 = vsub.f32 %v609, %v662
    %v708 = vsub.f32 %v612, %v662
    %v709 = vsub.f32 %v615, %v669
    %v710 = vsub.f32 %v618, %v669
    %v711 = vsub.f32 %v621, %v676
    %v712 = vsub.f32 %v624, %v676
    %v713 = vsub.f32 %v627, %v683
    %v714 = vsub.f32 %v630, %v683
    %v715 = vsub.f32 %v633, %v690
    %v716 = vsub.f32 %v636, %v690
    %v717 = vsub.f32 %v639, %v697
    %v718 = vsub.f32 %v642, %v697
    %v719 = vsub.f32 %v645, %v704
    %v720 = vsub.f32 %v648, %v704
    %v721 = vmul.f32 %v705, 1.442695
    %v722 = vpow.pop %v721
    %v723 = vmul.f32 %v706, 1.442695
    %v724 = vpow.pop %v723
    %v725 = vmul.f32 %v707, 1.442695
    %v726 = vpow.pop %v725
    %v727 = vmul.f32 %v708, 1.442695
    %v728 = vpow.pop %v727
    %v729 = vmul.f32 %v709, 1.442695
    %v730 = vpow.pop %v729
    %v731 = vmul.f32 %v710, 1.442695
    %v732 = vpow.pop %v731
    %v733 = vmul.f32 %v711, 1.442695
    %v734 = vpow.pop %v733
    %v735 = vmul.f32 %v712, 1.442695
    %v736 = vpow.pop %v735
    %v737 = vmul.f32 %v713, 1.442695
    %v738 = vpow.pop %v737
    %v739 = vmul.f32 %v714, 1.442695
    %v740 = vpow.pop %v739
    %v741 = vmul.f32 %v715, 1.442695
    %v742 = vpow.pop %v741
    %v743 = vmul.f32 %v716, 1.442695
    %v744 = vpow.pop %v743
    %v745 = vmul.f32 %v717, 1.442695
    %v746 = vpow.pop %v745
    %v747 = vmul.f32 %v718, 1.442695
    %v748 = vpow.pop %v747
    %v749 = vmul.f32 %v719, 1.442695
    %v750 = vpow.pop %v749
    %v751 = vmul.f32 %v720, 1.442695
    %v752 = vpow.pop %v751
    %v753 = vadd.f32 %v722, %v724
    %v754 = vrot.slane %v753, 4
    %v755 = vadd.f32 %v753, %v754
    %v756 = vrot.slane %v755, 2
    %v757 = vadd.f32 %v755, %v756
    %v758 = vrot.slane %v757, 1
    %v759 = vadd.f32 %v757, %v758
    %v760 = vadd.f32 %v726, %v728
    %v761 = vrot.slane %v760, 4
    %v762 = vadd.f32 %v760, %v761
    %v763 = vrot.slane %v762, 2
    %v764 = vadd.f32 %v762, %v763
    %v765 = vrot.slane %v764, 1
    %v766 = vadd.f32 %v764, %v765
    %v767 = vadd.f32 %v730, %v732
    %v768 = vrot.slane %v767, 4
    %v769 = vadd.f32 %v767, %v768
    %v770 = vrot.slane %v769, 2
    %v771 = vadd.f32 %v769, %v770
    %v772 = vrot.slane %v771, 1
    %v773 = vadd.f32 %v771, %v772
    %v774 = vadd.f32 %v734, %v736
    %v775 = vrot.slane %v774, 4
    %v776 = vadd.f32 %v774, %v775
    %v777 = vrot.slane %v776, 2
    %v778 = vadd.f32 %v776, %v777
    %v779 = vrot.slane %v778, 1
    %v780 = vadd.f32 %v778, %v779
    %v781 = vadd.f32 %v738, %v740
    %v782 = vrot.slane %v781, 4
    %v783 = vadd.f32 %v781, %v782
    %v784 = vrot.slane %v783, 2
    %v785 = vadd.f32 %v783, %v784
    %v786 = vrot.slane %v785, 1
    %v787 = vadd.f32 %v785, %v786
    %v788 = vadd.f32 %v742, %v744
    %v789 = vrot.slane %v788, 4
    %v790 = vadd.f32 %v788, %v789
    %v791 = vrot.slane %v790, 2
    %v792 = vadd.f32 %v790, %v791
    %v793 = vrot.slane %v792, 1
    %v794 = vadd.f32 %v792, %v793
    %v795 = vadd.f32 %v746, %v748
    %v796 = vrot.slane %v795, 4
    %v797 = vadd.f32 %v795, %v796
    %v798 = vrot.slane %v797, 2
    %v799 = vadd.f32 %v797, %v798
    %v800 = vrot.slane %v799, 1
    %v801 = vadd.f32 %v799, %v800
    %v802 = vadd.f32 %v750, %v752
    %v803 = vrot.slane %v802, 4
    %v804 = vadd.f32 %v802, %v803
    %v805 = vrot.slane %v804, 2
    %v806 = vadd.f32 %v804, %v805
    %v807 = vrot.slane %v806, 1
    %v808 = vadd.f32 %v806, %v807
    %v809 = vrcp.pop %v759
    %v810 = vmul.f32 %v722, %v809
    %v811 = vmul.f32 %v724, %v809
    %v812 = vrcp.pop %v766
    %v813 = vmul.f32 %v726, %v812
    %v814 = vmul.f32 %v728, %v812
    %v815 = vrcp.pop %v773
    %v816 = vmul.f32 %v730, %v815
    %v817 = vmul.f32 %v732, %v815
    %v818 = vrcp.pop %v780
    %v819 = vmul.f32 %v734, %v818
    %v820 = vmul.f32 %v736, %v818
    %v821 = vrcp.pop %v787
    %v822 = vmul.f32 %v738, %v821
    %v823 = vmul.f32 %v740, %v821
    %v824 = vrcp.pop %v794
    %v825 = vmul.f32 %v742, %v824
    %v826 = vmul.f32 %v744, %v824
    %v827 = vrcp.pop %v801
    %v828 = vmul.f32 %v746, %v827
    %v829 = vmul.f32 %v748, %v827
    %v830 = vrcp.pop %v808
    %v831 = vmul.f32 %v750, %v830
    %v832 = vmul.f32 %v752, %v830
    %v833 = vmul.f32 %v132, %v810
    %v834 = vmul.f32 %v133, %v811
    %v835 = vmul.f32 %v134, %v813
    %v836 = vmul.f32 %v135, %v814
    %v837 = vmul.f32 %v136, %v816
    %v838 = vmul.f32 %v137, %v817
    %v839 = vmul.f32 %v138, %v819
    %v840 = vmul.f32 %v139, %v820
    %v841 = vmul.f32 %v140, %v822
    %v842 = vmul.f32 %v141, %v823
    %v843 = vmul.f32 %v142, %v825
    %v844 = vmul.f32 %v143, %v826
    %v845 = vmul.f32 %v144, %v828
    %v846 = vmul.f32 %v145, %v829
    %v847 = vmul.f32 %v146, %v831
    %v848 = vmul.f32 %v147, %v832
    %v849 = vsel %vm171, %v833, 0.0
    %v850 = vsel %vm171, %v834, 0.0
    %v851 = vadd.f32 %v849, %v850
    %v852 = vrot.slane %v851, 4
    %v853 = vadd.f32 %v851, %v852
    %v854 = vrot.slane %v853, 2
    %v855 = vadd.f32 %v853, %v854
    %v856 = vrot.slane %v855, 1
    %v857 = vadd.f32 %v855, %v856
    %v858 = vsel %vm171, %v835, 0.0
    %v859 = vsel %vm171, %v836, 0.0
    %v860 = vadd.f32 %v858, %v859
    %v861 = vrot.slane %v860, 4
    %v862 = vadd.f32 %v860, %v861
    %v863 = vrot.slane %v862, 2
    %v864 = vadd.f32 %v862, %v863
    %v865 = vrot.slane %v864, 1
    %v866 = vadd.f32 %v864, %v865
    %v867 = vsel %vm171, %v837, 0.0
    %v868 = vsel %vm171, %v838, 0.0
    %v869 = vadd.f32 %v867, %v868
    %v870 = vrot.slane %v869, 4
    %v871 = vadd.f32 %v869, %v870
    %v872 = vrot.slane %v871, 2
    %v873 = vadd.f32 %v871, %v872
    %v874 = vrot.slane %v873, 1
    %v875 = vadd.f32 %v873, %v874
    %v876 = vsel %vm171, %v839, 0.0
    %v877 = vsel %vm171, %v840, 0.0
    %v878 = vadd.f32 %v876, %v877
    %v879 = vrot.slane %v878, 4
    %v880 = vadd.f32 %v878, %v879
    %v881 = vrot.slane %v880, 2
    %v882 = vadd.f32 %v880, %v881
    %v883 = vrot.slane %v882, 1
    %v884 = vadd.f32 %v882, %v883
    %v885 = vsel %vm171, %v841, 0.0
    %v886 = vsel %vm171, %v842, 0.0
    %v887 = vadd.f32 %v885, %v886
    %v888 = vrot.slane %v887, 4
    %v889 = vadd.f32 %v887, %v888
    %v890 = vrot.slane %v889, 2
    %v891 = vadd.f32 %v889, %v890
    %v892 = vrot.slane %v891, 1
    %v893 = vadd.f32 %v891, %v892
    %v894 = vsel %vm171, %v843, 0.0
    %v895 = vsel %vm171, %v844, 0.0
    %v896 = vadd.f32 %v894, %v895
    %v897 = vrot.slane %v896, 4
    %v898 = vadd.f32 %v896, %v897
    %v899 = vrot.slane %v898, 2
    %v900 = vadd.f32 %v898, %v899
    %v901 = vrot.slane %v900, 1
    %v902 = vadd.f32 %v900, %v901
    %v903 = vsel %vm171, %v845, 0.0
    %v904 = vsel %vm171, %v846, 0.0
    %v905 = vadd.f32 %v903, %v904
    %v906 = vrot.slane %v905, 4
    %v907 = vadd.f32 %v905, %v906
    %v908 = vrot.slane %v907, 2
    %v909 = vadd.f32 %v907, %v908
    %v910 = vrot.slane %v909, 1
    %v911 = vadd.f32 %v909, %v910
    %v912 = vsel %vm171, %v847, 0.0
    %v913 = vsel %vm171, %v848, 0.0
    %v914 = vadd.f32 %v912, %v913
    %v915 = vrot.slane %v914, 4
    %v916 = vadd.f32 %v914, %v915
    %v917 = vrot.slane %v916, 2
    %v918 = vadd.f32 %v916, %v917
    %v919 = vrot.slane %v918, 1
    %v920 = vadd.f32 %v918, %v919
    %vm929 = vcmask 1041409
    %v930 = vsel %vm929, %v866, %v857
    %vm931 = vcmask 1042434
    %v932 = vsel %vm931, %v875, %v930
    %vm933 = vcmask 1043459
    %v934 = vsel %vm933, %v884, %v932
    %vm935 = vcmask 1044484
    %v936 = vsel %vm935, %v893, %v934
    %vm937 = vcmask 1045509
    %v938 = vsel %vm937, %v902, %v936
    %vm939 = vcmask 1046534
    %v940 = vsel %vm939, %v911, %v938
    %vm941 = vcmask 1047559
    %v942 = vsel %vm941, %v920, %v940
    %943 = vrot.lane.b32.xlu0 %v942, 32
    %v944 = vpop.permute.xlu0 %943
    %v946 = vmul.f32 %v251, %v944
    %v947 = vld [vmem:[%s9] sm:$0xff]
    %v948 = vld [vmem:[%s9 + $0x8] sm:$0xff]
    %v949 = vld [vmem:[%s9 + $0x10] sm:$0xff]
    %v950 = vld [vmem:[%s9 + $0x18] sm:$0xff]
    %v951 = vld [vmem:[%s10] sm:$0xff]
    %v952 = vld [vmem:[%s10 + $0x8] sm:$0xff]
    %v953 = vld [vmem:[%s10 + $0x10] sm:$0xff]
    %v954 = vld [vmem:[%s10 + $0x18] sm:$0xff]
    %956 = vrot.lane.b32.xlu0 %v946, 96
    %v957 = vpop.permute.xlu0 %956
    %v958 = vsel %vm171, %v957, 0
    %960 = vmatprep.subr.mxu0 0.0
    %961 = vmatpush1.msra.mxu0 0.0
    %962 = vmatprep.subr.mxu0 0.0
    %963 = vmatpush1.msra.mxu0 0.0
    %964 = vmatprep.subr.mxu0 0.0
    %965 = vmatpush1.msra.mxu0 0.0
    %966 = vmatprep.subr.mxu0 0.0
    %967 = vmatpush1.msra.mxu0 0.0
    %968 = vmatprep.subr.mxu0 0.0
    %969 = vmatpush1.msra.mxu0 0.0
    %970 = vmatprep.subr.mxu0 0.0
    %971 = vmatpush1.msra.mxu0 0.0
    %972 = vmatprep.subr.mxu0 0.0
    %973 = vmatpush1.msra.mxu0 0.0
    %974 = vmatprep.subr.mxu0 0.0
    %975 = vmatpush1.msra.mxu0 0.0
    %976 = vmatprep.subr.mxu0 0.0
    %977 = vmatpush1.msra.mxu0 0.0
    %978 = vmatprep.subr.mxu0 0.0
    %979 = vmatpush1.msra.mxu0 0.0
    %980 = vmatprep.subr.mxu0 0.0
    %981 = vmatpush1.msra.mxu0 0.0
    %982 = vmatprep.subr.mxu0 0.0
    %983 = vmatpush1.msra.mxu0 0.0
    %984 = vmatprep.subr.mxu0 0.0
    %985 = vmatpush1.msra.mxu0 %v954
    %986 = vmatprep.subr.mxu0 0.0
    %987 = vmatpush1.msra.mxu0 %v953
    %988 = vmatprep.subr.mxu0 0.0
    %989 = vmatpush1.msra.mxu0 %v952
    %990 = vmatprep.subr.mxu0 0.0
    %991 = vmatpush1.msra.mxu0 %v951
    %992 = vmatprep.subr.mxu0 0.0
    %993 = vmatpush2.msra.mxu0 0.0
    %994 = vmatprep.subr.mxu0 0.0
    %995 = vmatpush2.msra.mxu0 0.0
    %996 = vmatprep.subr.mxu0 0.0
    %997 = vmatpush2.msra.mxu0 0.0
    %998 = vmatprep.subr.mxu0 0.0
    %999 = vmatpush2.msra.mxu0 0.0
    %1000 = vmatprep.subr.mxu0 0.0
    %1001 = vmatpush2.msra.mxu0 0.0
    %1002 = vmatprep.subr.mxu0 0.0
    %1003 = vmatpush2.msra.mxu0 0.0
    %1004 = vmatprep.subr.mxu0 0.0
    %1005 = vmatpush2.msra.mxu0 0.0
    %1006 = vmatprep.subr.mxu0 0.0
    %1007 = vmatpush2.msra.mxu0 0.0
    %1008 = vmatprep.subr.mxu0 0.0
    %1009 = vmatpush2.msra.mxu0 0.0
    %1010 = vmatprep.subr.mxu0 0.0
    %1011 = vmatpush2.msra.mxu0 0.0
    %1012 = vmatprep.subr.mxu0 0.0
    %1013 = vmatpush2.msra.mxu0 0.0
    %1014 = vmatprep.subr.mxu0 0.0
    %1015 = vmatpush2.msra.mxu0 0.0
    %1016 = vmatprep.subr.mxu0 0.0
    %1017 = vmatpush2.msra.mxu0 0.0
    %1018 = vmatprep.subr.mxu0 0.0
    %1019 = vmatpush2.msra.mxu0 0.0
    %1020 = vmatprep.subr.mxu0 0.0
    %1021 = vmatpush2.msra.mxu0 0.0
    %1022 = vmatprep.subr.mxu0 0.0
    %1023 = vmatpush2.msra.mxu0 0.0
    %1024 = vmatprep.mubr.f32.mxu0 0.0
    %1025 = vmatmul.mubr.f32.gmra.mxu0 %v958
    %v1026 = vpop.f32.mrf.mxu0
    %v1027 = vadd.f32 0.0, %v1026
    %v1028 = vpop.f32.mrf.mxu0
    %1029 = vdwg.mxu0
    %v1031 = vsel %vm171, %v148, 0
    %1033 = vmatprep.subr.mxu0 0.0
    %1034 = vmatpush1.msra.mxu0 0.0
    %1035 = vmatprep.subr.mxu0 0.0
    %1036 = vmatpush1.msra.mxu0 0.0
    %1037 = vmatprep.subr.mxu0 0.0
    %1038 = vmatpush1.msra.mxu0 0.0
    %1039 = vmatprep.subr.mxu0 0.0
    %1040 = vmatpush1.msra.mxu0 0.0
    %1041 = vmatprep.subr.mxu0 0.0
    %1042 = vmatpush1.msra.mxu0 0.0
    %1043 = vmatprep.subr.mxu0 0.0
    %1044 = vmatpush1.msra.mxu0 0.0
    %1045 = vmatprep.subr.mxu0 0.0
    %1046 = vmatpush1.msra.mxu0 0.0
    %1047 = vmatprep.subr.mxu0 0.0
    %1048 = vmatpush1.msra.mxu0 0.0
    %1049 = vmatprep.subr.mxu0 0.0
    %1050 = vmatpush1.msra.mxu0 0.0
    %1051 = vmatprep.subr.mxu0 0.0
    %1052 = vmatpush1.msra.mxu0 0.0
    %1053 = vmatprep.subr.mxu0 0.0
    %1054 = vmatpush1.msra.mxu0 0.0
    %1055 = vmatprep.subr.mxu0 0.0
    %1056 = vmatpush1.msra.mxu0 0.0
    %1057 = vmatprep.subr.mxu0 0.0
    %1058 = vmatpush1.msra.mxu0 %v950
    %1059 = vmatprep.subr.mxu0 0.0
    %1060 = vmatpush1.msra.mxu0 %v949
    %1061 = vmatprep.subr.mxu0 0.0
    %1062 = vmatpush1.msra.mxu0 %v948
    %1063 = vmatprep.subr.mxu0 0.0
    %1064 = vmatpush1.msra.mxu0 %v947
    %1065 = vmatprep.subr.mxu0 0.0
    %1066 = vmatpush2.msra.mxu0 0.0
    %1067 = vmatprep.subr.mxu0 0.0
    %1068 = vmatpush2.msra.mxu0 0.0
    %1069 = vmatprep.subr.mxu0 0.0
    %1070 = vmatpush2.msra.mxu0 0.0
    %1071 = vmatprep.subr.mxu0 0.0
    %1072 = vmatpush2.msra.mxu0 0.0
    %1073 = vmatprep.subr.mxu0 0.0
    %1074 = vmatpush2.msra.mxu0 0.0
    %1075 = vmatprep.subr.mxu0 0.0
    %1076 = vmatpush2.msra.mxu0 0.0
    %1077 = vmatprep.subr.mxu0 0.0
    %1078 = vmatpush2.msra.mxu0 0.0
    %1079 = vmatprep.subr.mxu0 0.0
    %1080 = vmatpush2.msra.mxu0 0.0
    %1081 = vmatprep.subr.mxu0 0.0
    %1082 = vmatpush2.msra.mxu0 0.0
    %1083 = vmatprep.subr.mxu0 0.0
    %1084 = vmatpush2.msra.mxu0 0.0
    %1085 = vmatprep.subr.mxu0 0.0
    %1086 = vmatpush2.msra.mxu0 0.0
    %1087 = vmatprep.subr.mxu0 0.0
    %1088 = vmatpush2.msra.mxu0 0.0
    %1089 = vmatprep.subr.mxu0 0.0
    %1090 = vmatpush2.msra.mxu0 0.0
    %1091 = vmatprep.subr.mxu0 0.0
    %1092 = vmatpush2.msra.mxu0 0.0
    %1093 = vmatprep.subr.mxu0 0.0
    %1094 = vmatpush2.msra.mxu0 0.0
    %1095 = vmatprep.subr.mxu0 0.0
    %1096 = vmatpush2.msra.mxu0 0.0
    %1097 = vmatprep.mubr.f32.mxu0 0.0
    %1098 = vmatmul.mubr.f32.gmra.mxu0 %v1031
    %v1099 = vpop.f32.mrf.mxu0
    %v1100 = vadd.f32 %v1027, %v1099
    %v1101 = vpop.f32.mrf.mxu0
    %1102 = vdwg.mxu0
    %v1103 = vadd.f32 %v1100, %v242
    %v1104 = vxor.u32 %v1103, 2147483648
    %v1105 = vmul.f32 %v1104, 1.442695
    %v1106 = vpow.pop %v1105
    %v1107 = vadd.f32 %v1106, 1.0
    %v1108 = vrcp.pop %v1107
    %v1109 = vmul.f32 1.0, %v1108
    %v1110 = vtanh.pop %v1103
    %1112 = vrot.lane.b32.xlu0 %v150, 32
    %v1113 = vpop.permute.xlu0 %1112
    %v1115 = vmul.f32 %v1109, %v1113
    %1117 = vrot.lane.b32.xlu0 %v1110, 64
    %v1118 = vpop.permute.xlu0 %1117
    %v1120 = vmul.f32 %v1109, %v1118
    %1122 = vrot.lane.b32.xlu0 %v1120, 32
    %v1123 = vpop.permute.xlu0 %1122
    %v1125 = vadd.f32 %v1115, %v1123
    %v1126 = vtanh.pop %v1125
    %1128 = vrot.lane.b32.xlu0 %v1126, 64
    %v1129 = vpop.permute.xlu0 %1128
    %v1131 = vmul.f32 %v1109, %v1129
    %v1132 = vld [vmem:[%s11] sm:$0xff]
    %v1133 = vld [vmem:[%s11 + $0x8] sm:$0xff]
    %v1134 = vld [vmem:[%s11 + $0x10] sm:$0xff]
    %v1135 = vld [vmem:[%s11 + $0x18] sm:$0xff]
    %v1136 = vld [vmem:[#allocation13] sm:$0x1]
    %v1138 = vlaneseq
    %v1139 = vshrl.u32 %v1138, 7
    %v1140 = vsub.s32 0, %v1139
    %v1141 = vrot.slane %v1136, %v1140
    %1144 = vrot.lane.b32.xlu0 %v1131, 32
    %v1145 = vpop.permute.xlu0 %1144
    %v1146 = vsel %vm171, %v1145, 0
    %1148 = vmatprep.subr.mxu0 0.0
    %1149 = vmatpush1.msra.mxu0 0.0
    %1150 = vmatprep.subr.mxu0 0.0
    %1151 = vmatpush1.msra.mxu0 0.0
    %1152 = vmatprep.subr.mxu0 0.0
    %1153 = vmatpush1.msra.mxu0 0.0
    %1154 = vmatprep.subr.mxu0 0.0
    %1155 = vmatpush1.msra.mxu0 0.0
    %1156 = vmatprep.subr.mxu0 0.0
    %1157 = vmatpush1.msra.mxu0 0.0
    %1158 = vmatprep.subr.mxu0 0.0
    %1159 = vmatpush1.msra.mxu0 0.0
    %1160 = vmatprep.subr.mxu0 0.0
    %1161 = vmatpush1.msra.mxu0 0.0
    %1162 = vmatprep.subr.mxu0 0.0
    %1163 = vmatpush1.msra.mxu0 0.0
    %1164 = vmatprep.subr.mxu0 0.0
    %1165 = vmatpush1.msra.mxu0 0.0
    %1166 = vmatprep.subr.mxu0 0.0
    %1167 = vmatpush1.msra.mxu0 0.0
    %1168 = vmatprep.subr.mxu0 0.0
    %1169 = vmatpush1.msra.mxu0 0.0
    %1170 = vmatprep.subr.mxu0 0.0
    %1171 = vmatpush1.msra.mxu0 0.0
    %1172 = vmatprep.subr.mxu0 0.0
    %1173 = vmatpush1.msra.mxu0 %v1135
    %1174 = vmatprep.subr.mxu0 0.0
    %1175 = vmatpush1.msra.mxu0 %v1134
    %1176 = vmatprep.subr.mxu0 0.0
    %1177 = vmatpush1.msra.mxu0 %v1133
    %1178 = vmatprep.subr.mxu0 0.0
    %1179 = vmatpush1.msra.mxu0 %v1132
    %1180 = vmatprep.subr.mxu0 0.0
    %1181 = vmatpush2.msra.mxu0 0.0
    %1182 = vmatprep.subr.mxu0 0.0
    %1183 = vmatpush2.msra.mxu0 0.0
    %1184 = vmatprep.subr.mxu0 0.0
    %1185 = vmatpush2.msra.mxu0 0.0
    %1186 = vmatprep.subr.mxu0 0.0
    %1187 = vmatpush2.msra.mxu0 0.0
    %1188 = vmatprep.subr.mxu0 0.0
    %1189 = vmatpush2.msra.mxu0 0.0
    %1190 = vmatprep.subr.mxu0 0.0
    %1191 = vmatpush2.msra.mxu0 0.0
    %1192 = vmatprep.subr.mxu0 0.0
    %1193 = vmatpush2.msra.mxu0 0.0
    %1194 = vmatprep.subr.mxu0 0.0
    %1195 = vmatpush2.msra.mxu0 0.0
    %1196 = vmatprep.subr.mxu0 0.0
    %1197 = vmatpush2.msra.mxu0 0.0
    %1198 = vmatprep.subr.mxu0 0.0
    %1199 = vmatpush2.msra.mxu0 0.0
    %1200 = vmatprep.subr.mxu0 0.0
    %1201 = vmatpush2.msra.mxu0 0.0
    %1202 = vmatprep.subr.mxu0 0.0
    %1203 = vmatpush2.msra.mxu0 0.0
    %1204 = vmatprep.subr.mxu0 0.0
    %1205 = vmatpush2.msra.mxu0 0.0
    %1206 = vmatprep.subr.mxu0 0.0
    %1207 = vmatpush2.msra.mxu0 0.0
    %1208 = vmatprep.subr.mxu0 0.0
    %1209 = vmatpush2.msra.mxu0 0.0
    %1210 = vmatprep.subr.mxu0 0.0
    %1211 = vmatpush2.msra.mxu0 0.0
    %1212 = vmatprep.mubr.f32.mxu0 0.0
    %1213 = vmatmul.mubr.f32.gmra.mxu0 %v1146
    %v1214 = vpop.f32.mrf.mxu0
    %v1215 = vadd.f32 %v1141, %v1214
    %v1216 = vpop.f32.mrf.mxu0
    %1217 = vdwg.mxu0
    %vm1218 = vcmask 523264
    %1219 = vst.msk [vmem:[#allocation14] sm:$0xff] %vm1218, %v1215
    %v1236 = vlaneseq
    %v1237 = vand.u32 %v1236, 127
    %v1238 = vlaneseq
    %v1239 = vshrl.u32 %v1238, 7
    %v1240 = vsub.s32 %v1237, %v1239
    %v1241 = vrot.slane %v810, %v1240
    %v1242 = vadd.s32 %v1237, 4294967288
    %v1243 = vlaneseq
    %v1244 = vshrl.u32 %v1243, 7
    %v1245 = vsub.s32 %v1242, %v1244
    %v1246 = vrot.slane %v811, %v1245
    %vm1247 = vcmask 130112
    %v1248 = vsel %vm1247, %v1246, %v1241
    %v1249 = vlaneseq
    %v1250 = vshrl.u32 %v1249, 7
    %v1251 = vsub.s32 %v1237, %v1250
    %v1252 = vrot.slane %v813, %v1251
    %v1253 = vlaneseq
    %v1254 = vshrl.u32 %v1253, 7
    %v1255 = vsub.s32 %v1242, %v1254
    %v1256 = vrot.slane %v814, %v1255
    %v1257 = vsel %vm1247, %v1256, %v1252
    %v1258 = vlaneseq
    %v1259 = vshrl.u32 %v1258, 7
    %v1260 = vsub.s32 %v1237, %v1259
    %v1261 = vrot.slane %v816, %v1260
    %v1262 = vlaneseq
    %v1263 = vshrl.u32 %v1262, 7
    %v1264 = vsub.s32 %v1242, %v1263
    %v1265 = vrot.slane %v817, %v1264
    %v1266 = vsel %vm1247, %v1265, %v1261
    %v1267 = vlaneseq
    %v1268 = vshrl.u32 %v1267, 7
    %v1269 = vsub.s32 %v1237, %v1268
    %v1270 = vrot.slane %v819, %v1269
    %v1271 = vlaneseq
    %v1272 = vshrl.u32 %v1271, 7
    %v1273 = vsub.s32 %v1242, %v1272
    %v1274 = vrot.slane %v820, %v1273
    %v1275 = vsel %vm1247, %v1274, %v1270
    %v1276 = vlaneseq
    %v1277 = vshrl.u32 %v1276, 7
    %v1278 = vsub.s32 %v1237, %v1277
    %v1279 = vrot.slane %v822, %v1278
    %v1280 = vlaneseq
    %v1281 = vshrl.u32 %v1280, 7
    %v1282 = vsub.s32 %v1242, %v1281
    %v1283 = vrot.slane %v823, %v1282
    %v1284 = vsel %vm1247, %v1283, %v1279
    %v1285 = vlaneseq
    %v1286 = vshrl.u32 %v1285, 7
    %v1287 = vsub.s32 %v1237, %v1286
    %v1288 = vrot.slane %v825, %v1287
    %v1289 = vlaneseq
    %v1290 = vshrl.u32 %v1289, 7
    %v1291 = vsub.s32 %v1242, %v1290
    %v1292 = vrot.slane %v826, %v1291
    %v1293 = vsel %vm1247, %v1292, %v1288
    %v1294 = vlaneseq
    %v1295 = vshrl.u32 %v1294, 7
    %v1296 = vsub.s32 %v1237, %v1295
    %v1297 = vrot.slane %v828, %v1296
    %v1298 = vlaneseq
    %v1299 = vshrl.u32 %v1298, 7
    %v1300 = vsub.s32 %v1242, %v1299
    %v1301 = vrot.slane %v829, %v1300
    %v1302 = vsel %vm1247, %v1301, %v1297
    %v1303 = vlaneseq
    %v1304 = vshrl.u32 %v1303, 7
    %v1305 = vsub.s32 %v1237, %v1304
    %v1306 = vrot.slane %v831, %v1305
    %v1307 = vlaneseq
    %v1308 = vshrl.u32 %v1307, 7
    %v1309 = vsub.s32 %v1242, %v1308
    %v1310 = vrot.slane %v832, %v1309
    %v1311 = vsel %vm1247, %v1310, %v1306
    %v1312 = vsel %vm929, %v1257, %v1248
    %v1313 = vsel %vm931, %v1266, %v1312
    %v1314 = vsel %vm933, %v1275, %v1313
    %v1315 = vsel %vm935, %v1284, %v1314
    %v1316 = vsel %vm937, %v1293, %v1315
    %v1317 = vsel %vm939, %v1302, %v1316
    %v1318 = vsel %vm941, %v1311, %v1317
    %vm1320 = vcmask 130048
    %1321 = vst.msk [vmem:[#allocation15] sm:$0xff] %vm1320, %v1318
    %1323 = vst.msk [vmem:[#allocation17] sm:$0xff] %vm171, %v1145
    %1325 = vrot.lane.b32.xlu0 %v1125, 96
    %v1326 = vpop.permute.xlu0 %1325
    %1328 = vst.msk [vmem:[#allocation18] sm:$0xff] %vm171, %v1326
    // Predicated region
    $region82: #{tpu_custom_call.1} parent=1 // pred_check
      _
    $region83: #{tpu_custom_call.1} parent=1 // pred_check_branch
      %1330 = sbr.rel (0) target = $region85
    $region84: #{tpu_custom_call.1} parent=1 // pred_region
      %s1332 = ssub.s32 128, 128
      %1333 = vsyncadd [#allocation4], %s1332
      %s1335 = sshll.u32 [#allocation14], 4
      %s1336 = int_to_ptr.vmem [resolvable:$true] %s1335
      %1338 = dma.vmem_to_hbm [thread:$0]  %s1336, 128, %s13, [#allocation4]
    $region85: #{tpu_custom_call.1} parent=1 // pred_fallthru
      _
    // Predicated region
    $region86: #{tpu_custom_call.1} parent=1 // pred_check
      _
    $region87: #{tpu_custom_call.1} parent=1 // pred_check_branch
      %1340 = sbr.rel (0) target = $region89
    $region88: #{tpu_custom_call.1} parent=1 // pred_region
      %s1342 = ssub.s32 128, 128
      %1343 = vsyncadd [#allocation16], %s1342
      %s1345 = sshll.u32 [#allocation15], 4
      %s1346 = int_to_ptr.vmem [resolvable:$true] %s1345
      %1348 = dma.vmem_to_hbm [thread:$0]  %s1346, 128, %s14, [#allocation16]
    $region89: #{tpu_custom_call.1} parent=1 // pred_fallthru
      _
    // Predicated region
    $region90: #{tpu_custom_call.1} parent=1 // pred_check
      _
    $region91: #{tpu_custom_call.1} parent=1 // pred_check_branch
      %1350 = sbr.rel (0) target = $region93
    $region92: #{tpu_custom_call.1} parent=1 // pred_region
      %s1352 = ssub.s32 128, 128
      %1353 = vsyncadd [#allocation16], %s1352
      %s1355 = sshll.u32 [#allocation17], 4
      %s1356 = int_to_ptr.vmem [resolvable:$true] %s1355
      %1358 = dma.vmem_to_hbm [thread:$0]  %s1356, 128, %s15, [#allocation16]
    $region93: #{tpu_custom_call.1} parent=1 // pred_fallthru
      _
    // Predicated region
    $region94: #{tpu_custom_call.1} parent=1 // pred_check
      _
    $region95: #{tpu_custom_call.1} parent=1 // pred_check_branch
      %1360 = sbr.rel (0) target = $region97
    $region96: #{tpu_custom_call.1} parent=1 // pred_region
      %s1362 = ssub.s32 128, 128
      %1363 = vsyncadd [#allocation19], %s1362
      %s1365 = sshll.u32 [#allocation18], 4
      %s1366 = int_to_ptr.vmem [resolvable:$true] %s1365
      %1368 = dma.vmem_to_hbm [thread:$0]  %s1366, 128, %s16, [#allocation19]
    $region97: #{tpu_custom_call.1} parent=1 // pred_fallthru
      _
    // Predicated region
    $region98: #{tpu_custom_call.1} parent=1 // pred_check
      _
    $region99: #{tpu_custom_call.1} parent=1 // pred_check_branch
      %1370 = sbr.rel (0) target = $region101
    $region100: #{tpu_custom_call.1} parent=1 // pred_region
      %1371 = dma.done [#allocation4], 128
    $region101: #{tpu_custom_call.1} parent=1 // pred_fallthru
      _
    // Predicated region
    $region102: #{tpu_custom_call.1} parent=1 // pred_check
      _
    $region103: #{tpu_custom_call.1} parent=1 // pred_check_branch
      %1373 = sbr.rel (0) target = $region105
    $region104: #{tpu_custom_call.1} parent=1 // pred_region
      %1374 = dma.done [#allocation16], 128
    $region105: #{tpu_custom_call.1} parent=1 // pred_fallthru
      _
    // Predicated region
    $region106: #{tpu_custom_call.1} parent=1 // pred_check
      _
    $region107: #{tpu_custom_call.1} parent=1 // pred_check_branch
      %1376 = sbr.rel (0) target = $region109
    $region108: #{tpu_custom_call.1} parent=1 // pred_region
      %1377 = dma.done [#allocation16], 128
    $region109: #{tpu_custom_call.1} parent=1 // pred_fallthru
      _
    // Predicated region
    $region110: #{tpu_custom_call.1} parent=1 // pred_check
      _
    $region111: #{tpu_custom_call.1} parent=1 // pred_check_branch
      %1379 = sbr.rel (0) target = $region113
    $region112: #{tpu_custom_call.1} parent=1 // pred_region
      %1380 = dma.done [#allocation19], 128
    $region113: #{tpu_custom_call.1} parent=1 // pred_fallthru
      _
    %1381 = vsyncpa [#allocation3], 1
    %1382 = vsyncpa [#allocation6], 1
    %1383 = vsyncpa [#allocation9], 1
    %1384 = vsyncpa [#allocation12], 1
    %1385 = vsyncpa [#allocation4], 1
    %1386 = vsyncpa [#allocation16], 1
    %1387 = vsyncpa [#allocation19], 1

</llo_original>
